<compile_context>
chip_gen: v7x
topology: tpu7x:2x2x1
jax: 0.10.0
libtpu: 0.0.40
codegen_flags: <defaults>
</compile_context>

<pallas_src>
import functools

import jax
import jax.numpy as jnp
from jax.experimental import pallas as pl
from jax.experimental.pallas import tpu as pltpu

LANE = 128
SUBLANE = 8


def _round_up(x, m):
    return (x + m - 1) // m * m


def _pad_to(a, shape):
    pads = [(0, t - s) for s, t in zip(a.shape, shape)]
    if all(p == (0, 0) for p in pads):
        return a
    return jnp.pad(a, pads)


def _tpu_limits():
    """Best-effort (vmem_limit_cap_bytes, mxu_width, multi_core). Conservative fallbacks."""
    kind = ""
    try:
        kind = jax.devices()[0].device_kind.lower()
    except Exception:
        pass
    vmem_phys = None
    try:
        vmem_phys = int(pltpu.get_tpu_info().vmem_capacity_bytes)
    except Exception:
        vmem_phys = None
    if vmem_phys is None:
        vmem_phys = (64 << 20) if "v7" in kind else (128 << 20)
    # Older gens (v2-v5) have 128-wide MXUs; v6e/v7x are 256-wide.
    mxu = 128 if any(v in kind for v in ("v2", "v3", "v4", "v5")) else 256
    multi_core = "v7" in kind           # 2 TensorCores per chip on v7x
    cap = (100 << 20) if vmem_phys >= (128 << 20) else (56 << 20)
    return cap, mxu, multi_core


# --------------------------------------------------------------------------- #
# Kernel
# --------------------------------------------------------------------------- #
def vae_forward_kernel(
    # batch-tiled inputs
    x_ref, eps_ref,
    # encoder params (VMEM-resident, single-buffered)
    w1_ref, b1_ref, w2_ref, b2_ref,
    wml_ref, bml_ref,                  # fused [mu | log_var] weight / bias
    # decoder params (VMEM-resident, single-buffered)
    dw1_ref, db1_ref, dw2_ref, db2_ref, dw3_ref, db3_ref,
    # batch-tiled outputs
    xhat_ref, mulv_ref,
    *, zp,
):
    f32 = jnp.float32
    bf16 = jnp.bfloat16

    x = x_ref[...]                                                       # already bf16

    # ---- Encoder ----
    # fc1 on pre-concatenated [x_row | x_col] (fused in the wrapper).
    h = jnp.dot(x, w1_ref[...], preferred_element_type=f32) + b1_ref[...]
    h = jnp.maximum(h, 0.0)                                              # ReLU (f32)

    h = jnp.dot(h.astype(bf16), w2_ref[...], preferred_element_type=f32) + b2_ref[...]
    h = jnp.maximum(h, 0.0)                                              # ReLU (f32)

    # fused [mu | log_var] head -> one wide MXU push, one lane-dense output
    mulv = jnp.dot(h.astype(bf16), wml_ref[...], preferred_element_type=f32) + bml_ref[...]
    mu = mulv[:, :zp]
    lv = mulv[:, zp:]

    # ---- Reparameterize: z = mu + eps * exp(0.5 * log_var) (all f32) ----
    z = mu + eps_ref[...] * jnp.exp(0.5 * lv)

    # ---- Decoder ----
    d = jnp.maximum(
        jnp.dot(z.astype(bf16), dw1_ref[...], preferred_element_type=f32) + db1_ref[...], 0.0)
    d = jnp.maximum(
        jnp.dot(d.astype(bf16), dw2_ref[...], preferred_element_type=f32) + db2_ref[...], 0.0)
    x_hat = jnp.dot(d.astype(bf16), dw3_ref[...], preferred_element_type=f32) + db3_ref[...]

    xhat_ref[...] = x_hat.astype(xhat_ref.dtype)                         # bf16 writeback
    mulv_ref[...] = mulv                                                 # f32 (feeds exp/KL)


# --------------------------------------------------------------------------- #
# Parameter preparation (fuse fc1 and mu|log_var heads, pad to lanes, cast to bf16)
# --------------------------------------------------------------------------- #
def prepare_params(params, n_dim, z_dim, hidden_dim):
    Dp = _round_up(n_dim, LANE)
    D2p = _round_up(2 * n_dim, LANE)        # fused fc1 contraction dim
    Hp = _round_up(hidden_dim, LANE)
    Zp = _round_up(z_dim, LANE)

    def wpad(a, shape):   # weights -> padded bf16
        return _pad_to(a, shape).astype(jnp.bfloat16)

    def bpad(a, shape):   # biases -> padded f32 (elementwise adds stay f32)
        return _pad_to(a, shape).astype(jnp.float32)

    # Fused fc1 weight: rows are [x_row features ; x_col features], matching torch.cat.
    w1 = jnp.concatenate([params["w1r"], params["w1c"]], axis=0)

    prepared = {
        "w1":  wpad(w1, (D2p, Hp)),
        "b1":  bpad(params["b1"], (1, Hp)),
        "w2":  wpad(params["w2"], (Hp, Hp)),
        "b2":  bpad(params["b2"], (1, Hp)),
        "wml": jnp.concatenate(
            [wpad(params["wmu"], (Hp, Zp)), wpad(params["wlv"], (Hp, Zp))], axis=1),
        "bml": jnp.concatenate(
            [bpad(params["bmu"], (1, Zp)), bpad(params["blv"], (1, Zp))], axis=1),
        "dw1": wpad(params["dw1"], (Zp, Hp)),
        "db1": bpad(params["db1"], (1, Hp)),
        "dw2": wpad(params["dw2"], (Hp, Hp)),
        "db2": bpad(params["db2"], (1, Hp)),
        "dw3": wpad(params["dw3"], (Hp, Dp)),
        "db3": bpad(params["db3"], (1, Dp)),
    }
    dims = {"D": n_dim, "Z": z_dim, "H": hidden_dim,
            "Dp": Dp, "D2p": D2p, "Hp": Hp, "Zp": Zp}
    return prepared, dims


# --------------------------------------------------------------------------- #
# Wrapper
# --------------------------------------------------------------------------- #
def vae_forward(x_row, x_col, eps, prepared, dims):
    B = x_row.shape[0]
    D, Z = dims["D"], dims["Z"]
    Dp, D2p, Hp, Zp = dims["Dp"], dims["D2p"], dims["Hp"], dims["Zp"]

    vmem_cap, mxu, multi_core = _tpu_limits()

    param_order = ("w1", "b1", "w2", "b2", "wml", "bml",
                   "dw1", "db1", "dw2", "db2", "dw3", "db3")
    param_arrays = tuple(prepared[k] for k in param_order)
    weight_bytes = sum(int(a.size) * a.dtype.itemsize for a in param_arrays)

    # ----- batch tile: match MXU width; on v7x ensure >= 2 grid steps for 2 TCs -----
    TB_MAX = 256 if mxu >= 256 else 128
    if multi_core and B > SUBLANE:
        TB = min(TB_MAX, _round_up(-(-B // 2), SUBLANE))
    else:
        TB = min(TB_MAX, _round_up(max(B, 1), SUBLANE))
    TB = max(TB, SUBLANE)

    def _tile_bytes(tb):
        in_tile = tb * D2p * 2 + tb * Zp * 4           # bf16 x, f32 eps
        out_tile = tb * Dp * 2 + tb * 2 * Zp * 4       # bf16 x_hat, f32 [mu|log_var]
        interm = tb * (2 * Hp + 3 * Zp + Dp) * 4       # h, d, mulv, z, x_hat f32 temporaries
        return in_tile, out_tile, interm

    # Shrink TB (keeping sublane multiples) if the exact budget would not fit the cap.
    while TB > SUBLANE:
        it, ot, im = _tile_bytes(TB)
        if weight_bytes + 2 * (it + ot) + im + (4 << 20) <= vmem_cap:
            break
        TB = max(SUBLANE, _round_up(TB // 2, SUBLANE))

    # No batch padding for real batches; only pad tiny batches up to one tile (<= TB-B rows).
    Bp = max(B, TB)
    grid = (pl.cdiv(Bp, TB),)

    # ----- inputs: concat + cast to bf16 + lane-pad in a single wrapper pass -----
    x_in = _pad_to(jnp.concatenate([x_row, x_col], axis=1).astype(jnp.bfloat16), (Bp, D2p))
    ep = _pad_to(eps.astype(jnp.float32), (Bp, Zp))

    # Batch-tiled activation / output specs.
    x_spec = pl.BlockSpec((TB, D2p), lambda i: (i, 0))
    eps_spec = pl.BlockSpec((TB, Zp), lambda i: (i, 0))
    out_xhat = pl.BlockSpec((TB, Dp), lambda i: (i, 0))
    out_mulv = pl.BlockSpec((TB, 2 * Zp), lambda i: (i, 0))

    # Advisory cost estimate for XLA scheduling around the custom call.
    flops = 2 * Bp * (D2p * Hp + Hp * Hp + Hp * 2 * Zp + Zp * Hp + Hp * Hp + Hp * Dp)
    in_bytes = int(x_in.size) * 2 + int(ep.size) * 4
    out_bytes = Bp * Dp * 2 + Bp * 2 * Zp * 4
    cost = pl.CostEstimate(flops=int(flops),
                           transcendentals=int(Bp * Zp),
                           bytes_accessed=int(in_bytes + weight_bytes + out_bytes))

    in_tile_b, out_tile_b, interm_b = _tile_bytes(TB)

    def _call(single_buffer_weights):
        if single_buffer_weights:
            # Constant index_map -> block never re-fetched; one buffer is enough.
            w_specs = [pl.BlockSpec(a.shape, lambda i: (0, 0),
                                    pipeline_mode=pl.Buffered(1)) for a in param_arrays]
            wbuf = 1
        else:
            w_specs = [pl.BlockSpec(a.shape, lambda i: (0, 0)) for a in param_arrays]
            wbuf = 2
        # Exact VMEM budget: resident params * buffer_count + double-buffered activation
        # and output tiles + f32 intermediates + headroom; clamped per generation.
        needed = wbuf * weight_bytes + 2 * (in_tile_b + out_tile_b) + interm_b
        vmem_limit = int(min(vmem_cap, max(needed + (4 << 20), 16 << 20)))
        return pl.pallas_call(
            functools.partial(vae_forward_kernel, zp=Zp),
            out_shape=(
                jax.ShapeDtypeStruct((Bp, Dp), jnp.bfloat16),       # x_hat (padded, bf16)
                jax.ShapeDtypeStruct((Bp, 2 * Zp), jnp.float32),    # [mu | log_var] (padded)
            ),
            grid=grid,
            in_specs=[x_spec, eps_spec] + w_specs,
            out_specs=(out_xhat, out_mulv),
            compiler_params=pltpu.CompilerParams(
                dimension_semantics=("parallel",),
                vmem_limit_bytes=vmem_limit,
            ),
            cost_estimate=cost,
        )(x_in, ep, *param_arrays)

    try:
        xhat_p, mulv_p = _call(True)
    except Exception:
        # Fallback for JAX builds that reject single-buffered (Buffered(1)) inputs.
        xhat_p, mulv_p = _call(False)

    x_hat = xhat_p[:B, :D].astype(jnp.float32)
    mu = mulv_p[:B, :Z]
    log_var = mulv_p[:B, Zp:Zp + Z]
    return x_hat, mu, log_var


# --------------------------------------------------------------------------- #
# Deterministic synthetic parameters (weights stored [in, out]) + f32 reference
# --------------------------------------------------------------------------- #
def init_params(key, n_dim, z_dim, hidden_dim):
    ks = jax.random.split(key, 14)
    s = 0.1

    def w(k, shape):
        return (s * jax.random.normal(k, shape)).astype(jnp.float32)

    return {
        # encoder fc1: in = 2*n_dim, split into row / col halves (fused later)
        "w1r": w(ks[0], (n_dim, hidden_dim)),
        "w1c": w(ks[1], (n_dim, hidden_dim)),
        "b1":  w(ks[2], (1, hidden_dim)),
        "w2":  w(ks[3], (hidden_dim, hidden_dim)),
        "b2":  w(ks[4], (1, hidden_dim)),
        "wmu": w(ks[5], (hidden_dim, z_dim)),
        "bmu": w(ks[6], (1, z_dim)),
        "wlv": w(ks[7], (hidden_dim, z_dim)),
        "blv": w(ks[8], (1, z_dim)),
        # decoder
        "dw1": w(ks[9], (z_dim, hidden_dim)),
        "db1": w(ks[10], (1, hidden_dim)),
        "dw2": w(ks[11], (hidden_dim, hidden_dim)),
        "db2": w(ks[12], (1, hidden_dim)),
        "dw3": w(ks[13], (hidden_dim, n_dim)),
        "db3": jnp.zeros((1, n_dim), jnp.float32),
    }


def vae_forward_ref(x_row, x_col, eps, p):
    """Pure-JAX f32 reference with the original module's semantics."""
    h = jnp.maximum(x_row @ p["w1r"] + x_col @ p["w1c"] + p["b1"], 0.0)
    h = jnp.maximum(h @ p["w2"] + p["b2"], 0.0)
    mu = h @ p["wmu"] + p["bmu"]
    lv = h @ p["wlv"] + p["blv"]
    z = mu + eps * jnp.exp(0.5 * lv)
    d = jnp.maximum(z @ p["dw1"] + p["db1"], 0.0)
    d = jnp.maximum(d @ p["dw2"] + p["db2"], 0.0)
    x_hat = d @ p["dw3"] + p["db3"]
    return x_hat, mu, lv


if __name__ == "__main__":
    B, N_DIM, Z_DIM, HIDDEN = 2, 16, 4, 64

    key = jax.random.PRNGKey(0)
    k_x_row, k_x_col, k_eps, k_params = jax.random.split(key, 4)

    x_row = jax.random.normal(k_x_row, (B, N_DIM), dtype=jnp.float32)
    x_col = jax.random.normal(k_x_col, (B, N_DIM), dtype=jnp.float32)
    # eps corresponds to torch.randn_like(std) in reparameterize (generated outside kernel)
    eps = jax.random.normal(k_eps, (B, Z_DIM), dtype=jnp.float32)

    params = init_params(k_params, N_DIM, Z_DIM, HIDDEN)
    prepared, dims = prepare_params(params, N_DIM, Z_DIM, HIDDEN)

    x_hat, mu, log_var = vae_forward(x_row, x_col, eps, prepared, dims)
    jax.block_until_ready((x_hat, mu, log_var))

    x_hat_r, mu_r, lv_r = vae_forward_ref(x_row, x_col, eps, params)
    assert x_hat.shape == (B, N_DIM) and mu.shape == (B, Z_DIM) and log_var.shape == (B, Z_DIM)
    # bf16 matmul operands / bf16 x_hat store (f32 accumulation) vs. f32 reference.
    assert jnp.allclose(x_hat, x_hat_r, atol=2e-2, rtol=2e-2)
    assert jnp.allclose(mu, mu_r, atol=2e-2, rtol=2e-2)
    assert jnp.allclose(log_var, lv_r, atol=2e-2, rtol=2e-2)

    print("KERNEL_OK")
</pallas_src>

<mosaic_0001>
module attributes {stable_mosaic.version = 11 : i64} {
  func.func @vae_forward_kernel(%arg0: i32, %arg1: memref<8x128xbf16, #tpu.memory_space<vmem>>, %arg2: memref<8x128xf32, #tpu.memory_space<vmem>>, %arg3: memref<128x128xbf16, #tpu.memory_space<vmem>>, %arg4: memref<1x128xf32, #tpu.memory_space<vmem>>, %arg5: memref<128x128xbf16, #tpu.memory_space<vmem>>, %arg6: memref<1x128xf32, #tpu.memory_space<vmem>>, %arg7: memref<128x256xbf16, #tpu.memory_space<vmem>>, %arg8: memref<1x256xf32, #tpu.memory_space<vmem>>, %arg9: memref<128x128xbf16, #tpu.memory_space<vmem>>, %arg10: memref<1x128xf32, #tpu.memory_space<vmem>>, %arg11: memref<128x128xbf16, #tpu.memory_space<vmem>>, %arg12: memref<1x128xf32, #tpu.memory_space<vmem>>, %arg13: memref<128x128xbf16, #tpu.memory_space<vmem>>, %arg14: memref<1x128xf32, #tpu.memory_space<vmem>>, %arg15: memref<8x128xbf16, #tpu.memory_space<vmem>>, %arg16: memref<8x256xf32, #tpu.memory_space<vmem>>) attributes {dimension_semantics = [#tpu.dimension_semantics<parallel>], iteration_bounds = array<i64: 1>, scalar_prefetch = 0 : i64, scratch_operands = 0 : i64, tpu.core_type = #tpu.core_type<tc>, window_params = [{transform_indices = @transform_0, window_bounds = array<i64: 8, 128>}, {transform_indices = @transform_1, window_bounds = array<i64: 8, 128>}, {pipeline_mode = #tpu.pipeline_mode<synchronous>, transform_indices = @transform_2, window_bounds = array<i64: 128, 128>}, {pipeline_mode = #tpu.pipeline_mode<synchronous>, transform_indices = @transform_3, window_bounds = array<i64: 1, 128>}, {pipeline_mode = #tpu.pipeline_mode<synchronous>, transform_indices = @transform_4, window_bounds = array<i64: 128, 128>}, {pipeline_mode = #tpu.pipeline_mode<synchronous>, transform_indices = @transform_5, window_bounds = array<i64: 1, 128>}, {pipeline_mode = #tpu.pipeline_mode<synchronous>, transform_indices = @transform_6, window_bounds = array<i64: 128, 256>}, {pipeline_mode = #tpu.pipeline_mode<synchronous>, transform_indices = @transform_7, window_bounds = array<i64: 1, 256>}, {pipeline_mode = #tpu.pipeline_mode<synchronous>, transform_indices = @transform_8, window_bounds = array<i64: 128, 128>}, {pipeline_mode = #tpu.pipeline_mode<synchronous>, transform_indices = @transform_9, window_bounds = array<i64: 1, 128>}, {pipeline_mode = #tpu.pipeline_mode<synchronous>, transform_indices = @transform_10, window_bounds = array<i64: 128, 128>}, {pipeline_mode = #tpu.pipeline_mode<synchronous>, transform_indices = @transform_11, window_bounds = array<i64: 1, 128>}, {pipeline_mode = #tpu.pipeline_mode<synchronous>, transform_indices = @transform_12, window_bounds = array<i64: 128, 128>}, {pipeline_mode = #tpu.pipeline_mode<synchronous>, transform_indices = @transform_13, window_bounds = array<i64: 1, 128>}, {transform_indices = @transform_14, window_bounds = array<i64: 8, 128>}, {transform_indices = @transform_15, window_bounds = array<i64: 8, 256>}]} {
    %c0 = arith.constant 0 : index
    %c0_0 = arith.constant 0 : index
    %0 = vector.load %arg1[%c0, %c0_0] : memref<8x128xbf16, #tpu.memory_space<vmem>>, vector<8x128xbf16>
    %c0_1 = arith.constant 0 : index
    %c0_2 = arith.constant 0 : index
    %1 = vector.load %arg3[%c0_1, %c0_2] : memref<128x128xbf16, #tpu.memory_space<vmem>>, vector<128x128xbf16>
    %cst = arith.constant dense<0.000000e+00> : vector<8x128xf32>
    %2 = tpu.matmul %0, %1, %cst {dimension_numbers = #tpu.dot_dimension_numbers<[1], [0], [0], [1], [0, 0, 1, 1], [], []>} : vector<8x128xbf16>, vector<128x128xbf16>, vector<8x128xf32> -> vector<8x128xf32>
    %c0_3 = arith.constant 0 : index
    %c0_4 = arith.constant 0 : index
    %3 = vector.load %arg4[%c0_3, %c0_4] : memref<1x128xf32, #tpu.memory_space<vmem>>, vector<1x128xf32>
    %4 = vector.broadcast %3 : vector<1x128xf32> to vector<8x128xf32>
    %5 = arith.addf %2, %4 : vector<8x128xf32>
    %cst_5 = arith.constant 0.000000e+00 : f32
    %6 = vector.broadcast %cst_5 : f32 to vector<8x128xf32>
    %7 = arith.maximumf %5, %6 : vector<8x128xf32>
    %8 = arith.truncf %7 : vector<8x128xf32> to vector<8x128xbf16>
    %c0_6 = arith.constant 0 : index
    %c0_7 = arith.constant 0 : index
    %9 = vector.load %arg5[%c0_6, %c0_7] : memref<128x128xbf16, #tpu.memory_space<vmem>>, vector<128x128xbf16>
    %cst_8 = arith.constant dense<0.000000e+00> : vector<8x128xf32>
    %10 = tpu.matmul %8, %9, %cst_8 {dimension_numbers = #tpu.dot_dimension_numbers<[1], [0], [0], [1], [0, 0, 1, 1], [], []>} : vector<8x128xbf16>, vector<128x128xbf16>, vector<8x128xf32> -> vector<8x128xf32>
    %c0_9 = arith.constant 0 : index
    %c0_10 = arith.constant 0 : index
    %11 = vector.load %arg6[%c0_9, %c0_10] : memref<1x128xf32, #tpu.memory_space<vmem>>, vector<1x128xf32>
    %12 = vector.broadcast %11 : vector<1x128xf32> to vector<8x128xf32>
    %13 = arith.addf %10, %12 : vector<8x128xf32>
    %cst_11 = arith.constant 0.000000e+00 : f32
    %14 = vector.broadcast %cst_11 : f32 to vector<8x128xf32>
    %15 = arith.maximumf %13, %14 : vector<8x128xf32>
    %16 = arith.truncf %15 : vector<8x128xf32> to vector<8x128xbf16>
    %c0_12 = arith.constant 0 : index
    %c0_13 = arith.constant 0 : index
    %17 = vector.load %arg7[%c0_12, %c0_13] : memref<128x256xbf16, #tpu.memory_space<vmem>>, vector<128x256xbf16>
    %cst_14 = arith.constant dense<0.000000e+00> : vector<8x256xf32>
    %18 = tpu.matmul %16, %17, %cst_14 {dimension_numbers = #tpu.dot_dimension_numbers<[1], [0], [0], [1], [0, 0, 1, 1], [], []>} : vector<8x128xbf16>, vector<128x256xbf16>, vector<8x256xf32> -> vector<8x256xf32>
    %c0_15 = arith.constant 0 : index
    %c0_16 = arith.constant 0 : index
    %19 = vector.load %arg8[%c0_15, %c0_16] : memref<1x256xf32, #tpu.memory_space<vmem>>, vector<1x256xf32>
    %20 = vector.broadcast %19 : vector<1x256xf32> to vector<8x256xf32>
    %21 = arith.addf %18, %20 : vector<8x256xf32>
    %22 = vector.extract_strided_slice %21 {offsets = [0, 0], sizes = [8, 128], strides = [1, 1]} : vector<8x256xf32> to vector<8x128xf32>
    %23 = vector.extract_strided_slice %21 {offsets = [0, 128], sizes = [8, 128], strides = [1, 1]} : vector<8x256xf32> to vector<8x128xf32>
    %c0_17 = arith.constant 0 : index
    %c0_18 = arith.constant 0 : index
    %24 = vector.load %arg2[%c0_17, %c0_18] : memref<8x128xf32, #tpu.memory_space<vmem>>, vector<8x128xf32>
    %cst_19 = arith.constant 5.000000e-01 : f32
    %25 = vector.broadcast %cst_19 : f32 to vector<8x128xf32>
    %26 = arith.mulf %25, %23 : vector<8x128xf32>
    %27 = math.exp %26 : vector<8x128xf32>
    %28 = arith.mulf %24, %27 : vector<8x128xf32>
    %29 = arith.addf %22, %28 : vector<8x128xf32>
    %30 = arith.truncf %29 : vector<8x128xf32> to vector<8x128xbf16>
    %c0_20 = arith.constant 0 : index
    %c0_21 = arith.constant 0 : index
    %31 = vector.load %arg9[%c0_20, %c0_21] : memref<128x128xbf16, #tpu.memory_space<vmem>>, vector<128x128xbf16>
    %cst_22 = arith.constant dense<0.000000e+00> : vector<8x128xf32>
    %32 = tpu.matmul %30, %31, %cst_22 {dimension_numbers = #tpu.dot_dimension_numbers<[1], [0], [0], [1], [0, 0, 1, 1], [], []>} : vector<8x128xbf16>, vector<128x128xbf16>, vector<8x128xf32> -> vector<8x128xf32>
    %c0_23 = arith.constant 0 : index
    %c0_24 = arith.constant 0 : index
    %33 = vector.load %arg10[%c0_23, %c0_24] : memref<1x128xf32, #tpu.memory_space<vmem>>, vector<1x128xf32>
    %34 = vector.broadcast %33 : vector<1x128xf32> to vector<8x128xf32>
    %35 = arith.addf %32, %34 : vector<8x128xf32>
    %cst_25 = arith.constant 0.000000e+00 : f32
    %36 = vector.broadcast %cst_25 : f32 to vector<8x128xf32>
    %37 = arith.maximumf %35, %36 : vector<8x128xf32>
    %38 = arith.truncf %37 : vector<8x128xf32> to vector<8x128xbf16>
    %c0_26 = arith.constant 0 : index
    %c0_27 = arith.constant 0 : index
    %39 = vector.load %arg11[%c0_26, %c0_27] : memref<128x128xbf16, #tpu.memory_space<vmem>>, vector<128x128xbf16>
    %cst_28 = arith.constant dense<0.000000e+00> : vector<8x128xf32>
    %40 = tpu.matmul %38, %39, %cst_28 {dimension_numbers = #tpu.dot_dimension_numbers<[1], [0], [0], [1], [0, 0, 1, 1], [], []>} : vector<8x128xbf16>, vector<128x128xbf16>, vector<8x128xf32> -> vector<8x128xf32>
    %c0_29 = arith.constant 0 : index
    %c0_30 = arith.constant 0 : index
    %41 = vector.load %arg12[%c0_29, %c0_30] : memref<1x128xf32, #tpu.memory_space<vmem>>, vector<1x128xf32>
    %42 = vector.broadcast %41 : vector<1x128xf32> to vector<8x128xf32>
    %43 = arith.addf %40, %42 : vector<8x128xf32>
    %cst_31 = arith.constant 0.000000e+00 : f32
    %44 = vector.broadcast %cst_31 : f32 to vector<8x128xf32>
    %45 = arith.maximumf %43, %44 : vector<8x128xf32>
    %46 = arith.truncf %45 : vector<8x128xf32> to vector<8x128xbf16>
    %c0_32 = arith.constant 0 : index
    %c0_33 = arith.constant 0 : index
    %47 = vector.load %arg13[%c0_32, %c0_33] : memref<128x128xbf16, #tpu.memory_space<vmem>>, vector<128x128xbf16>
    %cst_34 = arith.constant dense<0.000000e+00> : vector<8x128xf32>
    %48 = tpu.matmul %46, %47, %cst_34 {dimension_numbers = #tpu.dot_dimension_numbers<[1], [0], [0], [1], [0, 0, 1, 1], [], []>} : vector<8x128xbf16>, vector<128x128xbf16>, vector<8x128xf32> -> vector<8x128xf32>
    %c0_35 = arith.constant 0 : index
    %c0_36 = arith.constant 0 : index
    %49 = vector.load %arg14[%c0_35, %c0_36] : memref<1x128xf32, #tpu.memory_space<vmem>>, vector<1x128xf32>
    %50 = vector.broadcast %49 : vector<1x128xf32> to vector<8x128xf32>
    %51 = arith.addf %48, %50 : vector<8x128xf32>
    %52 = arith.truncf %51 : vector<8x128xf32> to vector<8x128xbf16>
    %c0_37 = arith.constant 0 : index
    %c0_38 = arith.constant 0 : index
    %53 = vector.load %arg15[%c0_37, %c0_38] : memref<8x128xbf16, #tpu.memory_space<vmem>>, vector<8x128xbf16>
    tpu.vector_store %arg15[%c0_37, %c0_38], %52 {strides = array<i32>} : memref<8x128xbf16, #tpu.memory_space<vmem>>, vector<8x128xbf16>,
    %c0_39 = arith.constant 0 : index
    %c0_40 = arith.constant 0 : index
    %54 = vector.load %arg16[%c0_39, %c0_40] : memref<8x256xf32, #tpu.memory_space<vmem>>, vector<8x256xf32>
    tpu.vector_store %arg16[%c0_39, %c0_40], %21 {strides = array<i32>} : memref<8x256xf32, #tpu.memory_space<vmem>>, vector<8x256xf32>,
    return
  }
  func.func @transform_0(%arg0: i32) -> (i32, i32) {
    %c0_i32 = arith.constant 0 : i32
    %c0_i32_0 = arith.constant 0 : i32
    return %arg0, %c0_i32 : i32, i32
  }
  func.func @transform_1(%arg0: i32) -> (i32, i32) {
    %c0_i32 = arith.constant 0 : i32
    %c0_i32_0 = arith.constant 0 : i32
    return %arg0, %c0_i32 : i32, i32
  }
  func.func @transform_2(%arg0: i32) -> (i32, i32) {
    %c0_i32 = arith.constant 0 : i32
    %c0_i32_0 = arith.constant 0 : i32
    %c0_i32_1 = arith.constant 0 : i32
    return %c0_i32, %c0_i32_0 : i32, i32
  }
  func.func @transform_3(%arg0: i32) -> (i32, i32) {
    %c0_i32 = arith.constant 0 : i32
    %c0_i32_0 = arith.constant 0 : i32
    %c0_i32_1 = arith.constant 0 : i32
    return %c0_i32, %c0_i32_0 : i32, i32
  }
  func.func @transform_4(%arg0: i32) -> (i32, i32) {
    %c0_i32 = arith.constant 0 : i32
    %c0_i32_0 = arith.constant 0 : i32
    %c0_i32_1 = arith.constant 0 : i32
    return %c0_i32, %c0_i32_0 : i32, i32
  }
  func.func @transform_5(%arg0: i32) -> (i32, i32) {
    %c0_i32 = arith.constant 0 : i32
    %c0_i32_0 = arith.constant 0 : i32
    %c0_i32_1 = arith.constant 0 : i32
    return %c0_i32, %c0_i32_0 : i32, i32
  }
  func.func @transform_6(%arg0: i32) -> (i32, i32) {
    %c0_i32 = arith.constant 0 : i32
    %c0_i32_0 = arith.constant 0 : i32
    %c0_i32_1 = arith.constant 0 : i32
    return %c0_i32, %c0_i32_0 : i32, i32
  }
  func.func @transform_7(%arg0: i32) -> (i32, i32) {
    %c0_i32 = arith.constant 0 : i32
    %c0_i32_0 = arith.constant 0 : i32
    %c0_i32_1 = arith.constant 0 : i32
    return %c0_i32, %c0_i32_0 : i32, i32
  }
  func.func @transform_8(%arg0: i32) -> (i32, i32) {
    %c0_i32 = arith.constant 0 : i32
    %c0_i32_0 = arith.constant 0 : i32
    %c0_i32_1 = arith.constant 0 : i32
    return %c0_i32, %c0_i32_0 : i32, i32
  }
  func.func @transform_9(%arg0: i32) -> (i32, i32) {
    %c0_i32 = arith.constant 0 : i32
    %c0_i32_0 = arith.constant 0 : i32
    %c0_i32_1 = arith.constant 0 : i32
    return %c0_i32, %c0_i32_0 : i32, i32
  }
  func.func @transform_10(%arg0: i32) -> (i32, i32) {
    %c0_i32 = arith.constant 0 : i32
    %c0_i32_0 = arith.constant 0 : i32
    %c0_i32_1 = arith.constant 0 : i32
    return %c0_i32, %c0_i32_0 : i32, i32
  }
  func.func @transform_11(%arg0: i32) -> (i32, i32) {
    %c0_i32 = arith.constant 0 : i32
    %c0_i32_0 = arith.constant 0 : i32
    %c0_i32_1 = arith.constant 0 : i32
    return %c0_i32, %c0_i32_0 : i32, i32
  }
  func.func @transform_12(%arg0: i32) -> (i32, i32) {
    %c0_i32 = arith.constant 0 : i32
    %c0_i32_0 = arith.constant 0 : i32
    %c0_i32_1 = arith.constant 0 : i32
    return %c0_i32, %c0_i32_0 : i32, i32
  }
  func.func @transform_13(%arg0: i32) -> (i32, i32) {
    %c0_i32 = arith.constant 0 : i32
    %c0_i32_0 = arith.constant 0 : i32
    %c0_i32_1 = arith.constant 0 : i32
    return %c0_i32, %c0_i32_0 : i32, i32
  }
  func.func @transform_14(%arg0: i32) -> (i32, i32) {
    %c0_i32 = arith.constant 0 : i32
    %c0_i32_0 = arith.constant 0 : i32
    return %arg0, %c0_i32 : i32, i32
  }
  func.func @transform_15(%arg0: i32) -> (i32, i32) {
    %c0_i32 = arith.constant 0 : i32
    %c0_i32_0 = arith.constant 0 : i32
    return %arg0, %c0_i32 : i32, i32
  }
}

module attributes {stable_mosaic.version = 11 : i64} {
  func.func @vae_forward_kernel(%arg0: i32, %arg1: memref<8x128xbf16, #tpu.memory_space<vmem>>, %arg2: memref<8x128xf32, #tpu.memory_space<vmem>>, %arg3: memref<128x128xbf16, #tpu.memory_space<vmem>>, %arg4: memref<1x128xf32, #tpu.memory_space<vmem>>, %arg5: memref<128x128xbf16, #tpu.memory_space<vmem>>, %arg6: memref<1x128xf32, #tpu.memory_space<vmem>>, %arg7: memref<128x256xbf16, #tpu.memory_space<vmem>>, %arg8: memref<1x256xf32, #tpu.memory_space<vmem>>, %arg9: memref<128x128xbf16, #tpu.memory_space<vmem>>, %arg10: memref<1x128xf32, #tpu.memory_space<vmem>>, %arg11: memref<128x128xbf16, #tpu.memory_space<vmem>>, %arg12: memref<1x128xf32, #tpu.memory_space<vmem>>, %arg13: memref<128x128xbf16, #tpu.memory_space<vmem>>, %arg14: memref<1x128xf32, #tpu.memory_space<vmem>>, %arg15: memref<8x128xbf16, #tpu.memory_space<vmem>>, %arg16: memref<8x256xf32, #tpu.memory_space<vmem>>) attributes {dimension_semantics = [#tpu.dimension_semantics<parallel>], iteration_bounds = array<i64: 1>, scalar_prefetch = 0 : i64, scratch_operands = 0 : i64, tpu.core_type = #tpu.core_type<tc>, window_params = [{transform_indices = @transform_0, window_bounds = array<i64: 8, 128>}, {transform_indices = @transform_1, window_bounds = array<i64: 8, 128>}, {pipeline_mode = #tpu.pipeline_mode<synchronous>, transform_indices = @transform_2, window_bounds = array<i64: 128, 128>}, {pipeline_mode = #tpu.pipeline_mode<synchronous>, transform_indices = @transform_3, window_bounds = array<i64: 1, 128>}, {pipeline_mode = #tpu.pipeline_mode<synchronous>, transform_indices = @transform_4, window_bounds = array<i64: 128, 128>}, {pipeline_mode = #tpu.pipeline_mode<synchronous>, transform_indices = @transform_5, window_bounds = array<i64: 1, 128>}, {pipeline_mode = #tpu.pipeline_mode<synchronous>, transform_indices = @transform_6, window_bounds = array<i64: 128, 256>}, {pipeline_mode = #tpu.pipeline_mode<synchronous>, transform_indices = @transform_7, window_bounds = array<i64: 1, 256>}, {pipeline_mode = #tpu.pipeline_mode<synchronous>, transform_indices = @transform_8, window_bounds = array<i64: 128, 128>}, {pipeline_mode = #tpu.pipeline_mode<synchronous>, transform_indices = @transform_9, window_bounds = array<i64: 1, 128>}, {pipeline_mode = #tpu.pipeline_mode<synchronous>, transform_indices = @transform_10, window_bounds = array<i64: 128, 128>}, {pipeline_mode = #tpu.pipeline_mode<synchronous>, transform_indices = @transform_11, window_bounds = array<i64: 1, 128>}, {pipeline_mode = #tpu.pipeline_mode<synchronous>, transform_indices = @transform_12, window_bounds = array<i64: 128, 128>}, {pipeline_mode = #tpu.pipeline_mode<synchronous>, transform_indices = @transform_13, window_bounds = array<i64: 1, 128>}, {transform_indices = @transform_14, window_bounds = array<i64: 8, 128>}, {transform_indices = @transform_15, window_bounds = array<i64: 8, 256>}]} {
    %c0 = arith.constant 0 : index
    %c0_0 = arith.constant 0 : index
    %0 = vector.load %arg1[%c0, %c0_0] : memref<8x128xbf16, #tpu.memory_space<vmem>>, vector<8x128xbf16>
    %c0_1 = arith.constant 0 : index
    %c0_2 = arith.constant 0 : index
    %1 = vector.load %arg3[%c0_1, %c0_2] : memref<128x128xbf16, #tpu.memory_space<vmem>>, vector<128x128xbf16>
    %cst = arith.constant dense<0.000000e+00> : vector<8x128xf32>
    %2 = tpu.matmul %0, %1, %cst {dimension_numbers = #tpu.dot_dimension_numbers<[1], [0], [0], [1], [0, 0, 1, 1], [], []>} : vector<8x128xbf16>, vector<128x128xbf16>, vector<8x128xf32> -> vector<8x128xf32>
    %c0_3 = arith.constant 0 : index
    %c0_4 = arith.constant 0 : index
    %3 = vector.load %arg4[%c0_3, %c0_4] : memref<1x128xf32, #tpu.memory_space<vmem>>, vector<1x128xf32>
    %4 = vector.broadcast %3 : vector<1x128xf32> to vector<8x128xf32>
    %5 = arith.addf %2, %4 : vector<8x128xf32>
    %cst_5 = arith.constant 0.000000e+00 : f32
    %6 = vector.broadcast %cst_5 : f32 to vector<8x128xf32>
    %7 = arith.maximumf %5, %6 : vector<8x128xf32>
    %8 = arith.truncf %7 : vector<8x128xf32> to vector<8x128xbf16>
    %c0_6 = arith.constant 0 : index
    %c0_7 = arith.constant 0 : index
    %9 = vector.load %arg5[%c0_6, %c0_7] : memref<128x128xbf16, #tpu.memory_space<vmem>>, vector<128x128xbf16>
    %cst_8 = arith.constant dense<0.000000e+00> : vector<8x128xf32>
    %10 = tpu.matmul %8, %9, %cst_8 {dimension_numbers = #tpu.dot_dimension_numbers<[1], [0], [0], [1], [0, 0, 1, 1], [], []>} : vector<8x128xbf16>, vector<128x128xbf16>, vector<8x128xf32> -> vector<8x128xf32>
    %c0_9 = arith.constant 0 : index
    %c0_10 = arith.constant 0 : index
    %11 = vector.load %arg6[%c0_9, %c0_10] : memref<1x128xf32, #tpu.memory_space<vmem>>, vector<1x128xf32>
    %12 = vector.broadcast %11 : vector<1x128xf32> to vector<8x128xf32>
    %13 = arith.addf %10, %12 : vector<8x128xf32>
    %cst_11 = arith.constant 0.000000e+00 : f32
    %14 = vector.broadcast %cst_11 : f32 to vector<8x128xf32>
    %15 = arith.maximumf %13, %14 : vector<8x128xf32>
    %16 = arith.truncf %15 : vector<8x128xf32> to vector<8x128xbf16>
    %c0_12 = arith.constant 0 : index
    %c0_13 = arith.constant 0 : index
    %17 = vector.load %arg7[%c0_12, %c0_13] : memref<128x256xbf16, #tpu.memory_space<vmem>>, vector<128x256xbf16>
    %cst_14 = arith.constant dense<0.000000e+00> : vector<8x256xf32>
    %18 = tpu.matmul %16, %17, %cst_14 {dimension_numbers = #tpu.dot_dimension_numbers<[1], [0], [0], [1], [0, 0, 1, 1], [], []>} : vector<8x128xbf16>, vector<128x256xbf16>, vector<8x256xf32> -> vector<8x256xf32>
    %c0_15 = arith.constant 0 : index
    %c0_16 = arith.constant 0 : index
    %19 = vector.load %arg8[%c0_15, %c0_16] : memref<1x256xf32, #tpu.memory_space<vmem>>, vector<1x256xf32>
    %20 = vector.broadcast %19 : vector<1x256xf32> to vector<8x256xf32>
    %21 = arith.addf %18, %20 : vector<8x256xf32>
    %22 = vector.extract_strided_slice %21 {offsets = [0, 0], sizes = [8, 128], strides = [1, 1]} : vector<8x256xf32> to vector<8x128xf32>
    %23 = vector.extract_strided_slice %21 {offsets = [0, 128], sizes = [8, 128], strides = [1, 1]} : vector<8x256xf32> to vector<8x128xf32>
    %c0_17 = arith.constant 0 : index
    %c0_18 = arith.constant 0 : index
    %24 = vector.load %arg2[%c0_17, %c0_18] : memref<8x128xf32, #tpu.memory_space<vmem>>, vector<8x128xf32>
    %cst_19 = arith.constant 5.000000e-01 : f32
    %25 = vector.broadcast %cst_19 : f32 to vector<8x128xf32>
    %26 = arith.mulf %25, %23 : vector<8x128xf32>
    %27 = math.exp %26 : vector<8x128xf32>
    %28 = arith.mulf %24, %27 : vector<8x128xf32>
    %29 = arith.addf %22, %28 : vector<8x128xf32>
    %30 = arith.truncf %29 : vector<8x128xf32> to vector<8x128xbf16>
    %c0_20 = arith.constant 0 : index
    %c0_21 = arith.constant 0 : index
    %31 = vector.load %arg9[%c0_20, %c0_21] : memref<128x128xbf16, #tpu.memory_space<vmem>>, vector<128x128xbf16>
    %cst_22 = arith.constant dense<0.000000e+00> : vector<8x128xf32>
    %32 = tpu.matmul %30, %31, %cst_22 {dimension_numbers = #tpu.dot_dimension_numbers<[1], [0], [0], [1], [0, 0, 1, 1], [], []>} : vector<8x128xbf16>, vector<128x128xbf16>, vector<8x128xf32> -> vector<8x128xf32>
    %c0_23 = arith.constant 0 : index
    %c0_24 = arith.constant 0 : index
    %33 = vector.load %arg10[%c0_23, %c0_24] : memref<1x128xf32, #tpu.memory_space<vmem>>, vector<1x128xf32>
    %34 = vector.broadcast %33 : vector<1x128xf32> to vector<8x128xf32>
    %35 = arith.addf %32, %34 : vector<8x128xf32>
    %cst_25 = arith.constant 0.000000e+00 : f32
    %36 = vector.broadcast %cst_25 : f32 to vector<8x128xf32>
    %37 = arith.maximumf %35, %36 : vector<8x128xf32>
    %38 = arith.truncf %37 : vector<8x128xf32> to vector<8x128xbf16>
    %c0_26 = arith.constant 0 : index
    %c0_27 = arith.constant 0 : index
    %39 = vector.load %arg11[%c0_26, %c0_27] : memref<128x128xbf16, #tpu.memory_space<vmem>>, vector<128x128xbf16>
    %cst_28 = arith.constant dense<0.000000e+00> : vector<8x128xf32>
    %40 = tpu.matmul %38, %39, %cst_28 {dimension_numbers = #tpu.dot_dimension_numbers<[1], [0], [0], [1], [0, 0, 1, 1], [], []>} : vector<8x128xbf16>, vector<128x128xbf16>, vector<8x128xf32> -> vector<8x128xf32>
    %c0_29 = arith.constant 0 : index
    %c0_30 = arith.constant 0 : index
    %41 = vector.load %arg12[%c0_29, %c0_30] : memref<1x128xf32, #tpu.memory_space<vmem>>, vector<1x128xf32>
    %42 = vector.broadcast %41 : vector<1x128xf32> to vector<8x128xf32>
    %43 = arith.addf %40, %42 : vector<8x128xf32>
    %cst_31 = arith.constant 0.000000e+00 : f32
    %44 = vector.broadcast %cst_31 : f32 to vector<8x128xf32>
    %45 = arith.maximumf %43, %44 : vector<8x128xf32>
    %46 = arith.truncf %45 : vector<8x128xf32> to vector<8x128xbf16>
    %c0_32 = arith.constant 0 : index
    %c0_33 = arith.constant 0 : index
    %47 = vector.load %arg13[%c0_32, %c0_33] : memref<128x128xbf16, #tpu.memory_space<vmem>>, vector<128x128xbf16>
    %cst_34 = arith.constant dense<0.000000e+00> : vector<8x128xf32>
    %48 = tpu.matmul %46, %47, %cst_34 {dimension_numbers = #tpu.dot_dimension_numbers<[1], [0], [0], [1], [0, 0, 1, 1], [], []>} : vector<8x128xbf16>, vector<128x128xbf16>, vector<8x128xf32> -> vector<8x128xf32>
    %c0_35 = arith.constant 0 : index
    %c0_36 = arith.constant 0 : index
    %49 = vector.load %arg14[%c0_35, %c0_36] : memref<1x128xf32, #tpu.memory_space<vmem>>, vector<1x128xf32>
    %50 = vector.broadcast %49 : vector<1x128xf32> to vector<8x128xf32>
    %51 = arith.addf %48, %50 : vector<8x128xf32>
    %52 = arith.truncf %51 : vector<8x128xf32> to vector<8x128xbf16>
    %c0_37 = arith.constant 0 : index
    %c0_38 = arith.constant 0 : index
    %53 = vector.load %arg15[%c0_37, %c0_38] : memref<8x128xbf16, #tpu.memory_space<vmem>>, vector<8x128xbf16>
    tpu.vector_store %arg15[%c0_37, %c0_38], %52 {strides = array<i32>} : memref<8x128xbf16, #tpu.memory_space<vmem>>, vector<8x128xbf16>,
    %c0_39 = arith.constant 0 : index
    %c0_40 = arith.constant 0 : index
    %54 = vector.load %arg16[%c0_39, %c0_40] : memref<8x256xf32, #tpu.memory_space<vmem>>, vector<8x256xf32>
    tpu.vector_store %arg16[%c0_39, %c0_40], %21 {strides = array<i32>} : memref<8x256xf32, #tpu.memory_space<vmem>>, vector<8x256xf32>,
    return
  }
  func.func @transform_0(%arg0: i32) -> (i32, i32) {
    %c0_i32 = arith.constant 0 : i32
    %c0_i32_0 = arith.constant 0 : i32
    return %arg0, %c0_i32 : i32, i32
  }
  func.func @transform_1(%arg0: i32) -> (i32, i32) {
    %c0_i32 = arith.constant 0 : i32
    %c0_i32_0 = arith.constant 0 : i32
    return %arg0, %c0_i32 : i32, i32
  }
  func.func @transform_2(%arg0: i32) -> (i32, i32) {
    %c0_i32 = arith.constant 0 : i32
    %c0_i32_0 = arith.constant 0 : i32
    %c0_i32_1 = arith.constant 0 : i32
    return %c0_i32, %c0_i32_0 : i32, i32
  }
  func.func @transform_3(%arg0: i32) -> (i32, i32) {
    %c0_i32 = arith.constant 0 : i32
    %c0_i32_0 = arith.constant 0 : i32
    %c0_i32_1 = arith.constant 0 : i32
    return %c0_i32, %c0_i32_0 : i32, i32
  }
  func.func @transform_4(%arg0: i32) -> (i32, i32) {
    %c0_i32 = arith.constant 0 : i32
    %c0_i32_0 = arith.constant 0 : i32
    %c0_i32_1 = arith.constant 0 : i32
    return %c0_i32, %c0_i32_0 : i32, i32
  }
  func.func @transform_5(%arg0: i32) -> (i32, i32) {
    %c0_i32 = arith.constant 0 : i32
    %c0_i32_0 = arith.constant 0 : i32
    %c0_i32_1 = arith.constant 0 : i32
    return %c0_i32, %c0_i32_0 : i32, i32
  }
  func.func @transform_6(%arg0: i32) -> (i32, i32) {
    %c0_i32 = arith.constant 0 : i32
    %c0_i32_0 = arith.constant 0 : i32
    %c0_i32_1 = arith.constant 0 : i32
    return %c0_i32, %c0_i32_0 : i32, i32
  }
  func.func @transform_7(%arg0: i32) -> (i32, i32) {
    %c0_i32 = arith.constant 0 : i32
    %c0_i32_0 = arith.constant 0 : i32
    %c0_i32_1 = arith.constant 0 : i32
    return %c0_i32, %c0_i32_0 : i32, i32
  }
  func.func @transform_8(%arg0: i32) -> (i32, i32) {
    %c0_i32 = arith.constant 0 : i32
    %c0_i32_0 = arith.constant 0 : i32
    %c0_i32_1 = arith.constant 0 : i32
    return %c0_i32, %c0_i32_0 : i32, i32
  }
  func.func @transform_9(%arg0: i32) -> (i32, i32) {
    %c0_i32 = arith.constant 0 : i32
    %c0_i32_0 = arith.constant 0 : i32
    %c0_i32_1 = arith.constant 0 : i32
    return %c0_i32, %c0_i32_0 : i32, i32
  }
  func.func @transform_10(%arg0: i32) -> (i32, i32) {
    %c0_i32 = arith.constant 0 : i32
    %c0_i32_0 = arith.constant 0 : i32
    %c0_i32_1 = arith.constant 0 : i32
    return %c0_i32, %c0_i32_0 : i32, i32
  }
  func.func @transform_11(%arg0: i32) -> (i32, i32) {
    %c0_i32 = arith.constant 0 : i32
    %c0_i32_0 = arith.constant 0 : i32
    %c0_i32_1 = arith.constant 0 : i32
    return %c0_i32, %c0_i32_0 : i32, i32
  }
  func.func @transform_12(%arg0: i32) -> (i32, i32) {
    %c0_i32 = arith.constant 0 : i32
    %c0_i32_0 = arith.constant 0 : i32
    %c0_i32_1 = arith.constant 0 : i32
    return %c0_i32, %c0_i32_0 : i32, i32
  }
  func.func @transform_13(%arg0: i32) -> (i32, i32) {
    %c0_i32 = arith.constant 0 : i32
    %c0_i32_0 = arith.constant 0 : i32
    %c0_i32_1 = arith.constant 0 : i32
    return %c0_i32, %c0_i32_0 : i32, i32
  }
  func.func @transform_14(%arg0: i32) -> (i32, i32) {
    %c0_i32 = arith.constant 0 : i32
    %c0_i32_0 = arith.constant 0 : i32
    return %arg0, %c0_i32 : i32, i32
  }
  func.func @transform_15(%arg0: i32) -> (i32, i32) {
    %c0_i32 = arith.constant 0 : i32
    %c0_i32_0 = arith.constant 0 : i32
    return %arg0, %c0_i32 : i32, i32
  }
}

</mosaic_0001>

<llo_original>
// kernel: tpu_custom_call.1
$region0: #{tpu_custom_call.1}
  #allocation0 [shape = 'u32[]', space=smem, size = 0x4, offset = 0x4, fixed_abs, tag = 'smem constant byte address 0x4 - core index']
  #allocation1 [shape = 'u32[144,128]{1,0:T(1,128)}', space=vmem, size = 0x12000, scoped, tag = 'internal scratch']
  %s0 = inlined_call_operand.hbm [shape: bf16[8,128], index: 0, kind: input, shape index: {}]
  %s1 = inlined_call_operand.hbm [shape: f32[8,128], index: 1, kind: input, shape index: {}]
  %s2 = inlined_call_operand.hbm [shape: bf16[128,128], index: 2, kind: input, shape index: {}]
  %s3 = inlined_call_operand.vmem [shape: f32[1,128], index: 3, kind: input, shape index: {}]
  %s4 = inlined_call_operand.hbm [shape: bf16[128,128], index: 4, kind: input, shape index: {}]
  %s5 = inlined_call_operand.vmem [shape: f32[1,128], index: 5, kind: input, shape index: {}]
  %s6 = inlined_call_operand.hbm [shape: bf16[128,256], index: 6, kind: input, shape index: {}]
  %s7 = inlined_call_operand.vmem [shape: f32[1,256], index: 7, kind: input, shape index: {}]
  %s8 = inlined_call_operand.hbm [shape: bf16[128,128], index: 8, kind: input, shape index: {}]
  %s9 = inlined_call_operand.vmem [shape: f32[1,128], index: 9, kind: input, shape index: {}]
  %s10 = inlined_call_operand.hbm [shape: bf16[128,128], index: 10, kind: input, shape index: {}]
  %s11 = inlined_call_operand.vmem [shape: f32[1,128], index: 11, kind: input, shape index: {}]
  %s12 = inlined_call_operand.hbm [shape: bf16[128,128], index: 12, kind: input, shape index: {}]
  %s13 = inlined_call_operand.vmem [shape: f32[1,128], index: 13, kind: input, shape index: {}]
  %s14 = inlined_call_operand.hbm [shape: bf16[8,128], index: 14, kind: output, shape index: {0}]
  %s15 = inlined_call_operand.hbm [shape: f32[8,256], index: 15, kind: output, shape index: {1}]
  %16 = xla_tuple %s14, %s15
  %s17 = sld [smem:[#allocation0]]
  $region106: #{tpu_custom_call.1} parent=0
    _
  %s19 = ssub.s32 1, %s17
  %s20 = scalar_select 0, %s19, %s17
  $region1: #{tpu_custom_call.1} parent=0
    #allocation2 [shape = 'u8[2048]{0}', space=vmem, size = 0x800, scoped, tag = 'input window, operand 0, single buffered']
    #allocation3 [shape = 's32[1]{0}', space=sflag, size = 0x4, scoped, tag = 'scoped memory for tpu_custom_call.1']
    #allocation4 [shape = 's32[1]{0}', space=sflag, size = 0x4, scoped, tag = 'scoped memory for tpu_custom_call.1']
    #allocation5 [shape = 'u8[4096]{0}', space=vmem, size = 0x1000, scoped, tag = 'input window, operand 1, single buffered']
    #allocation6 [shape = 's32[1]{0}', space=sflag, size = 0x4, scoped, tag = 'scoped memory for tpu_custom_call.1']
    #allocation7 [shape = 'u8[32768]{0}', space=vmem, size = 0x8000, scoped, tag = 'input window, operand 2, single buffered']
    #allocation8 [shape = 'u8[32768]{0}', space=vmem, size = 0x8000, scoped, tag = 'input window, operand 4, single buffered']
    #allocation9 [shape = 's32[1]{0}', space=sflag, size = 0x4, scoped, tag = 'scoped memory for tpu_custom_call.1']
    #allocation10 [shape = 'u8[65536]{0}', space=vmem, size = 0x10000, scoped, tag = 'input window, operand 6, single buffered']
    #allocation11 [shape = 'u8[32768]{0}', space=vmem, size = 0x8000, scoped, tag = 'input window, operand 8, single buffered']
    #allocation12 [shape = 's32[1]{0}', space=sflag, size = 0x4, scoped, tag = 'scoped memory for tpu_custom_call.1']
    #allocation13 [shape = 'u8[32768]{0}', space=vmem, size = 0x8000, scoped, tag = 'input window, operand 10, single buffered']
    #allocation14 [shape = 'u8[32768]{0}', space=vmem, size = 0x8000, scoped, tag = 'input window, operand 12, single buffered']
    #allocation15 [shape = 's32[1]{0}', space=sflag, size = 0x4, scoped, tag = 'scoped memory for tpu_custom_call.1']
    #allocation16 [shape = 'u8[2048]{0}', space=vmem, size = 0x800, scoped, tag = 'output window, operand 0, single buffered']
    #allocation17 [shape = 'u8[8192]{0}', space=vmem, size = 0x2000, scoped, tag = 'output window, operand 1, single buffered']
    #allocation18 [shape = 's32[1]{0}', space=sflag, size = 0x4, scoped, tag = 'scoped memory for tpu_custom_call.1']
    %21 = vsyncpa [#allocation3], 0
    %22 = vsyncpa [#allocation6], 0
    %23 = vsyncpa [#allocation9], 0
    %24 = vsyncpa [#allocation12], 0
    %25 = vsyncpa [#allocation15], 0
    %26 = vsyncpa [#allocation4], 0
    %27 = vsyncpa [#allocation18], 0
    // Predicated region
    $region2: #{tpu_custom_call.1} parent=1 // pred_check
      _
    $region3: #{tpu_custom_call.1} parent=1 // pred_check_branch
      %29 = sbr.rel (0) target = $region5
    $region4: #{tpu_custom_call.1} parent=1 // pred_region
      %s31 = ssub.s32 64, 64
      %32 = vsyncadd [#allocation3], %s31
      %s34 = sshll.u32 [#allocation2], 4
      %s35 = int_to_ptr.vmem [resolvable:$true] %s34
      %37 = dma.hbm_to_vmem [thread:$0]  %s0, 64, %s35, [#allocation3]
    $region5: #{tpu_custom_call.1} parent=1 // pred_fallthru
      _
    // Predicated region
    $region6: #{tpu_custom_call.1} parent=1 // pred_check
      _
    $region7: #{tpu_custom_call.1} parent=1 // pred_check_branch
      %39 = sbr.rel (0) target = $region9
    $region8: #{tpu_custom_call.1} parent=1 // pred_region
      %s41 = ssub.s32 128, 128
      %42 = vsyncadd [#allocation6], %s41
      %s44 = sshll.u32 [#allocation5], 4
      %s45 = int_to_ptr.vmem [resolvable:$true] %s44
      %47 = dma.hbm_to_vmem [thread:$0]  %s1, 128, %s45, [#allocation6]
    $region9: #{tpu_custom_call.1} parent=1 // pred_fallthru
      _
    // Predicated region
    $region10: #{tpu_custom_call.1} parent=1 // pred_check
      _
    $region11: #{tpu_custom_call.1} parent=1 // pred_check_branch
      %49 = sbr.rel (0) target = $region13
    $region12: #{tpu_custom_call.1} parent=1 // pred_region
      %s51 = ssub.s32 1024, 1024
      %52 = vsyncadd [#allocation6], %s51
      %s53 = sshll.u32 [#allocation7], 4
      %s54 = int_to_ptr.vmem [resolvable:$true] %s53
      %59 = dma.hbm_to_vmem [thread:$0]  %s2, 1024, %s54, [#allocation6], 64, 64, 4
    $region13: #{tpu_custom_call.1} parent=1 // pred_fallthru
      _
    // Predicated region
    $region14: #{tpu_custom_call.1} parent=1 // pred_check
      _
    $region15: #{tpu_custom_call.1} parent=1 // pred_check_branch
      %61 = sbr.rel (0) target = $region17
    $region16: #{tpu_custom_call.1} parent=1 // pred_region
      _
    $region17: #{tpu_custom_call.1} parent=1 // pred_fallthru
      _
    // Predicated region
    $region18: #{tpu_custom_call.1} parent=1 // pred_check
      _
    $region19: #{tpu_custom_call.1} parent=1 // pred_check_branch
      %63 = sbr.rel (0) target = $region21
    $region20: #{tpu_custom_call.1} parent=1 // pred_region
      %s65 = ssub.s32 1024, 1024
      %66 = vsyncadd [#allocation9], %s65
      %s67 = sshll.u32 [#allocation8], 4
      %s68 = int_to_ptr.vmem [resolvable:$true] %s67
      %73 = dma.hbm_to_vmem [thread:$0]  %s4, 1024, %s68, [#allocation9], 64, 64, 4
    $region21: #{tpu_custom_call.1} parent=1 // pred_fallthru
      _
    // Predicated region
    $region22: #{tpu_custom_call.1} parent=1 // pred_check
      _
    $region23: #{tpu_custom_call.1} parent=1 // pred_check_branch
      %75 = sbr.rel (0) target = $region25
    $region24: #{tpu_custom_call.1} parent=1 // pred_region
      _
    $region25: #{tpu_custom_call.1} parent=1 // pred_fallthru
      _
    // Predicated region
    $region26: #{tpu_custom_call.1} parent=1 // pred_check
      _
    $region27: #{tpu_custom_call.1} parent=1 // pred_check_branch
      %77 = sbr.rel (0) target = $region29
    $region28: #{tpu_custom_call.1} parent=1 // pred_region
      %s79 = ssub.s32 2048, 2048
      %80 = vsyncadd [#allocation9], %s79
      %s81 = sshll.u32 [#allocation10], 4
      %s82 = int_to_ptr.vmem [resolvable:$true] %s81
      %87 = dma.hbm_to_vmem [thread:$0]  %s6, 2048, %s82, [#allocation9], 128, 128, 8
    $region29: #{tpu_custom_call.1} parent=1 // pred_fallthru
      _
    // Predicated region
    $region30: #{tpu_custom_call.1} parent=1 // pred_check
      _
    $region31: #{tpu_custom_call.1} parent=1 // pred_check_branch
      %89 = sbr.rel (0) target = $region33
    $region32: #{tpu_custom_call.1} parent=1 // pred_region
      _
    $region33: #{tpu_custom_call.1} parent=1 // pred_fallthru
      _
    // Predicated region
    $region34: #{tpu_custom_call.1} parent=1 // pred_check
      _
    $region35: #{tpu_custom_call.1} parent=1 // pred_check_branch
      %91 = sbr.rel (0) target = $region37
    $region36: #{tpu_custom_call.1} parent=1 // pred_region
      %s93 = ssub.s32 1024, 1024
      %94 = vsyncadd [#allocation12], %s93
      %s95 = sshll.u32 [#allocation11], 4
      %s96 = int_to_ptr.vmem [resolvable:$true] %s95
      %101 = dma.hbm_to_vmem [thread:$0]  %s8, 1024, %s96, [#allocation12], 64, 64, 4
    $region37: #{tpu_custom_call.1} parent=1 // pred_fallthru
      _
    // Predicated region
    $region38: #{tpu_custom_call.1} parent=1 // pred_check
      _
    $region39: #{tpu_custom_call.1} parent=1 // pred_check_branch
      %103 = sbr.rel (0) target = $region41
    $region40: #{tpu_custom_call.1} parent=1 // pred_region
      _
    $region41: #{tpu_custom_call.1} parent=1 // pred_fallthru
      _
    // Predicated region
    $region42: #{tpu_custom_call.1} parent=1 // pred_check
      _
    $region43: #{tpu_custom_call.1} parent=1 // pred_check_branch
      %105 = sbr.rel (0) target = $region45
    $region44: #{tpu_custom_call.1} parent=1 // pred_region
      %s107 = ssub.s32 1024, 1024
      %108 = vsyncadd [#allocation12], %s107
      %s109 = sshll.u32 [#allocation13], 4
      %s110 = int_to_ptr.vmem [resolvable:$true] %s109
      %115 = dma.hbm_to_vmem [thread:$0]  %s10, 1024, %s110, [#allocation12], 64, 64, 4
    $region45: #{tpu_custom_call.1} parent=1 // pred_fallthru
      _
    // Predicated region
    $region46: #{tpu_custom_call.1} parent=1 // pred_check
      _
    $region47: #{tpu_custom_call.1} parent=1 // pred_check_branch
      %117 = sbr.rel (0) target = $region49
    $region48: #{tpu_custom_call.1} parent=1 // pred_region
      _
    $region49: #{tpu_custom_call.1} parent=1 // pred_fallthru
      _
    // Predicated region
    $region50: #{tpu_custom_call.1} parent=1 // pred_check
      _
    $region51: #{tpu_custom_call.1} parent=1 // pred_check_branch
      %119 = sbr.rel (0) target = $region53
    $region52: #{tpu_custom_call.1} parent=1 // pred_region
      %s121 = ssub.s32 1024, 1024
      %122 = vsyncadd [#allocation15], %s121
      %s123 = sshll.u32 [#allocation14], 4
      %s124 = int_to_ptr.vmem [resolvable:$true] %s123
      %129 = dma.hbm_to_vmem [thread:$0]  %s12, 1024, %s124, [#allocation15], 64, 64, 4
    $region53: #{tpu_custom_call.1} parent=1 // pred_fallthru
      _
    // Predicated region
    $region54: #{tpu_custom_call.1} parent=1 // pred_check
      _
    $region55: #{tpu_custom_call.1} parent=1 // pred_check_branch
      %131 = sbr.rel (0) target = $region57
    $region56: #{tpu_custom_call.1} parent=1 // pred_region
      _
    $region57: #{tpu_custom_call.1} parent=1 // pred_fallthru
      _
    // Predicated region
    $region58: #{tpu_custom_call.1} parent=1 // pred_check
      _
    $region59: #{tpu_custom_call.1} parent=1 // pred_check_branch
      %133 = sbr.rel (0) target = $region61
    $region60: #{tpu_custom_call.1} parent=1 // pred_region
      %134 = dma.done [#allocation3], 64
    $region61: #{tpu_custom_call.1} parent=1 // pred_fallthru
      _
    // Predicated region
    $region62: #{tpu_custom_call.1} parent=1 // pred_check
      _
    $region63: #{tpu_custom_call.1} parent=1 // pred_check_branch
      %136 = sbr.rel (0) target = $region65
    $region64: #{tpu_custom_call.1} parent=1 // pred_region
      %137 = dma.done [#allocation6], 128
    $region65: #{tpu_custom_call.1} parent=1 // pred_fallthru
      _
    // Predicated region
    $region66: #{tpu_custom_call.1} parent=1 // pred_check
      _
    $region67: #{tpu_custom_call.1} parent=1 // pred_check_branch
      %139 = sbr.rel (0) target = $region69
    $region68: #{tpu_custom_call.1} parent=1 // pred_region
      %140 = dma.done [#allocation6], 1024
    $region69: #{tpu_custom_call.1} parent=1 // pred_fallthru
      _
    // Predicated region
    $region70: #{tpu_custom_call.1} parent=1 // pred_check
      _
    $region71: #{tpu_custom_call.1} parent=1 // pred_check_branch
      %142 = sbr.rel (0) target = $region73
    $region72: #{tpu_custom_call.1} parent=1 // pred_region
      %143 = dma.done [#allocation9], 1024
    $region73: #{tpu_custom_call.1} parent=1 // pred_fallthru
      _
    // Predicated region
    $region74: #{tpu_custom_call.1} parent=1 // pred_check
      _
    $region75: #{tpu_custom_call.1} parent=1 // pred_check_branch
      %145 = sbr.rel (0) target = $region77
    $region76: #{tpu_custom_call.1} parent=1 // pred_region
      %146 = dma.done [#allocation9], 2048
    $region77: #{tpu_custom_call.1} parent=1 // pred_fallthru
      _
    // Predicated region
    $region78: #{tpu_custom_call.1} parent=1 // pred_check
      _
    $region79: #{tpu_custom_call.1} parent=1 // pred_check_branch
      %148 = sbr.rel (0) target = $region81
    $region80: #{tpu_custom_call.1} parent=1 // pred_region
      %149 = dma.done [#allocation12], 1024
    $region81: #{tpu_custom_call.1} parent=1 // pred_fallthru
      _
    // Predicated region
    $region82: #{tpu_custom_call.1} parent=1 // pred_check
      _
    $region83: #{tpu_custom_call.1} parent=1 // pred_check_branch
      %151 = sbr.rel (0) target = $region85
    $region84: #{tpu_custom_call.1} parent=1 // pred_region
      %152 = dma.done [#allocation12], 1024
    $region85: #{tpu_custom_call.1} parent=1 // pred_fallthru
      _
    // Predicated region
    $region86: #{tpu_custom_call.1} parent=1 // pred_check
      _
    $region87: #{tpu_custom_call.1} parent=1 // pred_check_branch
      %154 = sbr.rel (0) target = $region89
    $region88: #{tpu_custom_call.1} parent=1 // pred_region
      %155 = dma.done [#allocation15], 1024
    $region89: #{tpu_custom_call.1} parent=1 // pred_fallthru
      _
    %v157 = vld [vmem:[#allocation2] sm:$0xf]
    %v158 = vld [vmem:[#allocation7] sm:$0xf]
    %v159 = vld [vmem:[#allocation7 + $0x4] sm:$0xf]
    %v160 = vld [vmem:[#allocation7 + $0x8] sm:$0xf]
    %v161 = vld [vmem:[#allocation7 + $0xc] sm:$0xf]
    %v162 = vld [vmem:[#allocation7 + $0x10] sm:$0xf]
    %v163 = vld [vmem:[#allocation7 + $0x14] sm:$0xf]
    %v164 = vld [vmem:[#allocation7 + $0x18] sm:$0xf]
    %v165 = vld [vmem:[#allocation7 + $0x1c] sm:$0xf]
    %v166 = vld [vmem:[#allocation7 + $0x20] sm:$0xf]
    %v167 = vld [vmem:[#allocation7 + $0x24] sm:$0xf]
    %v168 = vld [vmem:[#allocation7 + $0x28] sm:$0xf]
    %v169 = vld [vmem:[#allocation7 + $0x2c] sm:$0xf]
    %v170 = vld [vmem:[#allocation7 + $0x30] sm:$0xf]
    %v171 = vld [vmem:[#allocation7 + $0x34] sm:$0xf]
    %v172 = vld [vmem:[#allocation7 + $0x38] sm:$0xf]
    %v173 = vld [vmem:[#allocation7 + $0x3c] sm:$0xf]
    %v174 = vld [vmem:[%s3] sm:$0x1]
    %v176 = vlaneseq
    %v177 = vshrl.u32 %v176, 7
    %v178 = vsub.s32 0, %v177
    %v179 = vrot.slane %v174, %v178
    %v197 = vunpack.c.l.b16 %v158
    %v198 = vunpack.c.l.b16 %v159
    %v199 = vunpack.c.l.b16 %v160
    %v200 = vunpack.c.l.b16 %v161
    %v201 = vunpack.c.l.b16 %v162
    %v202 = vunpack.c.l.b16 %v163
    %v203 = vunpack.c.l.b16 %v164
    %v204 = vunpack.c.l.b16 %v165
    %v205 = vunpack.c.l.b16 %v166
    %v206 = vunpack.c.l.b16 %v167
    %v207 = vunpack.c.l.b16 %v168
    %v208 = vunpack.c.l.b16 %v169
    %v209 = vunpack.c.l.b16 %v170
    %v210 = vunpack.c.l.b16 %v171
    %v211 = vunpack.c.l.b16 %v172
    %v212 = vunpack.c.l.b16 %v173
    %v213 = vpack.c.b16 %v198, %v197
    %v214 = vpack.c.b16 %v200, %v199
    %v215 = vpack.c.b16 %v202, %v201
    %v216 = vpack.c.b16 %v204, %v203
    %v217 = vpack.c.b16 %v206, %v205
    %v218 = vpack.c.b16 %v208, %v207
    %v219 = vpack.c.b16 %v210, %v209
    %v220 = vpack.c.b16 %v212, %v211
    %229 = vmatprep.subr.bf16.mxu0 0
    %230 = vmatpush1.bf16.msra.mxu0 %v213
    %231 = vmatprep.subr.bf16.mxu0 0
    %232 = vmatpush1.bf16.msra.mxu0 %v214
    %233 = vmatprep.subr.bf16.mxu0 0
    %234 = vmatpush1.bf16.msra.mxu0 %v215
    %235 = vmatprep.subr.bf16.mxu0 0
    %236 = vmatpush1.bf16.msra.mxu0 %v216
    %237 = vmatprep.subr.bf16.mxu0 0
    %238 = vmatpush1.bf16.msra.mxu0 %v217
    %239 = vmatprep.subr.bf16.mxu0 0
    %240 = vmatpush1.bf16.msra.mxu0 %v218
    %241 = vmatprep.subr.bf16.mxu0 0
    %242 = vmatpush1.bf16.msra.mxu0 %v219
    %243 = vmatprep.subr.bf16.mxu0 0
    %244 = vmatpush1.bf16.msra.mxu0 %v220
    %245 = vmatprep.subr.bf16.mxu0 0
    %246 = vmatpush1.bf16.msra.mxu0 0
    %247 = vmatprep.subr.bf16.mxu0 0
    %248 = vmatpush1.bf16.msra.mxu0 0
    %249 = vmatprep.subr.bf16.mxu0 0
    %250 = vmatpush1.bf16.msra.mxu0 0
    %251 = vmatprep.subr.bf16.mxu0 0
    %252 = vmatpush1.bf16.msra.mxu0 0
    %253 = vmatprep.subr.bf16.mxu0 0
    %254 = vmatpush1.bf16.msra.mxu0 0
    %255 = vmatprep.subr.bf16.mxu0 0
    %256 = vmatpush1.bf16.msra.mxu0 0
    %257 = vmatprep.subr.bf16.mxu0 0
    %258 = vmatpush1.bf16.msra.mxu0 0
    %259 = vmatprep.subr.bf16.mxu0 0
    %260 = vmatpush1.bf16.msra.mxu0 0
    %261 = vmatprep.mubr.bf16.mxu0 0
    %262 = vmatmul.mubr.bf16.gmra.mrb[0].mxu0 %v157
    %v263 = vpop.f32.mrb[0].mxu0
    %v264 = vadd.f32 %v179, %v263
    %v265 = vpop.f32.mrb[0].mxu0
    %v266 = vpop.f32.mrb[0].mxu0
    %v267 = vpop.f32.mrb[0].mxu0
    %268 = vdwg.mxu0
    %v269 = vmax.f32 %v264, 0.0
    %v270 = vpack.c.bf16 %v269, %v269
    %v271 = vld [vmem:[#allocation8] sm:$0xf]
    %v272 = vld [vmem:[#allocation8 + $0x4] sm:$0xf]
    %v273 = vld [vmem:[#allocation8 + $0x8] sm:$0xf]
    %v274 = vld [vmem:[#allocation8 + $0xc] sm:$0xf]
    %v275 = vld [vmem:[#allocation8 + $0x10] sm:$0xf]
    %v276 = vld [vmem:[#allocation8 + $0x14] sm:$0xf]
    %v277 = vld [vmem:[#allocation8 + $0x18] sm:$0xf]
    %v278 = vld [vmem:[#allocation8 + $0x1c] sm:$0xf]
    %v279 = vld [vmem:[#allocation8 + $0x20] sm:$0xf]
    %v280 = vld [vmem:[#allocation8 + $0x24] sm:$0xf]
    %v281 = vld [vmem:[#allocation8 + $0x28] sm:$0xf]
    %v282 = vld [vmem:[#allocation8 + $0x2c] sm:$0xf]
    %v283 = vld [vmem:[#allocation8 + $0x30] sm:$0xf]
    %v284 = vld [vmem:[#allocation8 + $0x34] sm:$0xf]
    %v285 = vld [vmem:[#allocation8 + $0x38] sm:$0xf]
    %v286 = vld [vmem:[#allocation8 + $0x3c] sm:$0xf]
    %v287 = vld [vmem:[%s5] sm:$0x1]
    %v289 = vlaneseq
    %v290 = vshrl.u32 %v289, 7
    %v291 = vsub.s32 0, %v290
    %v292 = vrot.slane %v287, %v291
    %v310 = vunpack.c.l.b16 %v271
    %v311 = vunpack.c.l.b16 %v272
    %v312 = vunpack.c.l.b16 %v273
    %v313 = vunpack.c.l.b16 %v274
    %v314 = vunpack.c.l.b16 %v275
    %v315 = vunpack.c.l.b16 %v276
    %v316 = vunpack.c.l.b16 %v277
    %v317 = vunpack.c.l.b16 %v278
    %v318 = vunpack.c.l.b16 %v279
    %v319 = vunpack.c.l.b16 %v280
    %v320 = vunpack.c.l.b16 %v281
    %v321 = vunpack.c.l.b16 %v282
    %v322 = vunpack.c.l.b16 %v283
    %v323 = vunpack.c.l.b16 %v284
    %v324 = vunpack.c.l.b16 %v285
    %v325 = vunpack.c.l.b16 %v286
    %v326 = vpack.c.b16 %v311, %v310
    %v327 = vpack.c.b16 %v313, %v312
    %v328 = vpack.c.b16 %v315, %v314
    %v329 = vpack.c.b16 %v317, %v316
    %v330 = vpack.c.b16 %v319, %v318
    %v331 = vpack.c.b16 %v321, %v320
    %v332 = vpack.c.b16 %v323, %v322
    %v333 = vpack.c.b16 %v325, %v324
    %342 = vmatprep.subr.bf16.mxu0 0
    %343 = vmatpush1.bf16.msra.mxu0 %v326
    %344 = vmatprep.subr.bf16.mxu0 0
    %345 = vmatpush1.bf16.msra.mxu0 %v327
    %346 = vmatprep.subr.bf16.mxu0 0
    %347 = vmatpush1.bf16.msra.mxu0 %v328
    %348 = vmatprep.subr.bf16.mxu0 0
    %349 = vmatpush1.bf16.msra.mxu0 %v329
    %350 = vmatprep.subr.bf16.mxu0 0
    %351 = vmatpush1.bf16.msra.mxu0 %v330
    %352 = vmatprep.subr.bf16.mxu0 0
    %353 = vmatpush1.bf16.msra.mxu0 %v331
    %354 = vmatprep.subr.bf16.mxu0 0
    %355 = vmatpush1.bf16.msra.mxu0 %v332
    %356 = vmatprep.subr.bf16.mxu0 0
    %357 = vmatpush1.bf16.msra.mxu0 %v333
    %358 = vmatprep.subr.bf16.mxu0 0
    %359 = vmatpush1.bf16.msra.mxu0 0
    %360 = vmatprep.subr.bf16.mxu0 0
    %361 = vmatpush1.bf16.msra.mxu0 0
    %362 = vmatprep.subr.bf16.mxu0 0
    %363 = vmatpush1.bf16.msra.mxu0 0
    %364 = vmatprep.subr.bf16.mxu0 0
    %365 = vmatpush1.bf16.msra.mxu0 0
    %366 = vmatprep.subr.bf16.mxu0 0
    %367 = vmatpush1.bf16.msra.mxu0 0
    %368 = vmatprep.subr.bf16.mxu0 0
    %369 = vmatpush1.bf16.msra.mxu0 0
    %370 = vmatprep.subr.bf16.mxu0 0
    %371 = vmatpush1.bf16.msra.mxu0 0
    %372 = vmatprep.subr.bf16.mxu0 0
    %373 = vmatpush1.bf16.msra.mxu0 0
    %374 = vmatprep.mubr.bf16.mxu0 0
    %375 = vmatmul.mubr.bf16.gmra.mrb[0].mxu0 %v270
    %v376 = vpop.f32.mrb[0].mxu0
    %v377 = vadd.f32 %v292, %v376
    %v378 = vpop.f32.mrb[0].mxu0
    %v379 = vpop.f32.mrb[0].mxu0
    %v380 = vpop.f32.mrb[0].mxu0
    %381 = vdwg.mxu0
    %v382 = vmax.f32 %v377, 0.0
    %v383 = vpack.c.bf16 %v382, %v382
    %v384 = vld [vmem:[#allocation10] sm:$0xff]
    %v385 = vld [vmem:[#allocation10 + $0x8] sm:$0xff]
    %v386 = vld [vmem:[#allocation10 + $0x10] sm:$0xff]
    %v387 = vld [vmem:[#allocation10 + $0x18] sm:$0xff]
    %v388 = vld [vmem:[#allocation10 + $0x20] sm:$0xff]
    %v389 = vld [vmem:[#allocation10 + $0x28] sm:$0xff]
    %v390 = vld [vmem:[#allocation10 + $0x30] sm:$0xff]
    %v391 = vld [vmem:[#allocation10 + $0x38] sm:$0xff]
    %v392 = vld [vmem:[#allocation10 + $0x40] sm:$0xff]
    %v393 = vld [vmem:[#allocation10 + $0x48] sm:$0xff]
    %v394 = vld [vmem:[#allocation10 + $0x50] sm:$0xff]
    %v395 = vld [vmem:[#allocation10 + $0x58] sm:$0xff]
    %v396 = vld [vmem:[#allocation10 + $0x60] sm:$0xff]
    %v397 = vld [vmem:[#allocation10 + $0x68] sm:$0xff]
    %v398 = vld [vmem:[#allocation10 + $0x70] sm:$0xff]
    %v399 = vld [vmem:[#allocation10 + $0x78] sm:$0xff]
    %v400 = vld [vmem:[%s7] sm:$0x3]
    %v402 = vlaneseq
    %v403 = vshrl.u32 %v402, 7
    %v404 = vsub.s32 0, %v403
    %v405 = vrot.slane %v400, %v404
    %v406 = vlaneseq
    %v407 = vshrl.u32 %v406, 7
    %v408 = vsub.s32 1, %v407
    %v409 = vrot.slane %v400, %v408
    %v428 = vunpack.c.l.b16 %v384
    %v429 = vunpack.c.h.b16 %v384
    %v430 = vunpack.c.l.b16 %v385
    %v431 = vunpack.c.h.b16 %v385
    %v432 = vunpack.c.l.b16 %v386
    %v433 = vunpack.c.h.b16 %v386
    %v434 = vunpack.c.l.b16 %v387
    %v435 = vunpack.c.h.b16 %v387
    %v436 = vunpack.c.l.b16 %v388
    %v437 = vunpack.c.h.b16 %v388
    %v438 = vunpack.c.l.b16 %v389
    %v439 = vunpack.c.h.b16 %v389
    %v440 = vunpack.c.l.b16 %v390
    %v441 = vunpack.c.h.b16 %v390
    %v442 = vunpack.c.l.b16 %v391
    %v443 = vunpack.c.h.b16 %v391
    %v444 = vunpack.c.l.b16 %v392
    %v445 = vunpack.c.h.b16 %v392
    %v446 = vunpack.c.l.b16 %v393
    %v447 = vunpack.c.h.b16 %v393
    %v448 = vunpack.c.l.b16 %v394
    %v449 = vunpack.c.h.b16 %v394
    %v450 = vunpack.c.l.b16 %v395
    %v451 = vunpack.c.h.b16 %v395
    %v452 = vunpack.c.l.b16 %v396
    %v453 = vunpack.c.h.b16 %v396
    %v454 = vunpack.c.l.b16 %v397
    %v455 = vunpack.c.h.b16 %v397
    %v456 = vunpack.c.l.b16 %v398
    %v457 = vunpack.c.h.b16 %v398
    %v458 = vunpack.c.l.b16 %v399
    %v459 = vunpack.c.h.b16 %v399
    %v460 = vpack.c.b16 %v430, %v428
    %v461 = vpack.c.b16 %v431, %v429
    %v462 = vpack.c.b16 %v434, %v432
    %v463 = vpack.c.b16 %v435, %v433
    %v464 = vpack.c.b16 %v438, %v436
    %v465 = vpack.c.b16 %v439, %v437
    %v466 = vpack.c.b16 %v442, %v440
    %v467 = vpack.c.b16 %v443, %v441
    %v468 = vpack.c.b16 %v446, %v444
    %v469 = vpack.c.b16 %v447, %v445
    %v470 = vpack.c.b16 %v450, %v448
    %v471 = vpack.c.b16 %v451, %v449
    %v472 = vpack.c.b16 %v454, %v452
    %v473 = vpack.c.b16 %v455, %v453
    %v474 = vpack.c.b16 %v458, %v456
    %v475 = vpack.c.b16 %v459, %v457
    %492 = vmatprep.subr.bf16.mxu0 %v461
    %493 = vmatpush1.bf16.msra.mxu0 %v460
    %494 = vmatprep.subr.bf16.mxu0 %v463
    %495 = vmatpush1.bf16.msra.mxu0 %v462
    %496 = vmatprep.subr.bf16.mxu0 %v465
    %497 = vmatpush1.bf16.msra.mxu0 %v464
    %498 = vmatprep.subr.bf16.mxu0 %v467
    %499 = vmatpush1.bf16.msra.mxu0 %v466
    %500 = vmatprep.subr.bf16.mxu0 %v469
    %501 = vmatpush1.bf16.msra.mxu0 %v468
    %502 = vmatprep.subr.bf16.mxu0 %v471
    %503 = vmatpush1.bf16.msra.mxu0 %v470
    %504 = vmatprep.subr.bf16.mxu0 %v473
    %505 = vmatpush1.bf16.msra.mxu0 %v472
    %506 = vmatprep.subr.bf16.mxu0 %v475
    %507 = vmatpush1.bf16.msra.mxu0 %v474
    %508 = vmatprep.subr.bf16.mxu0 0
    %509 = vmatpush1.bf16.msra.mxu0 0
    %510 = vmatprep.subr.bf16.mxu0 0
    %511 = vmatpush1.bf16.msra.mxu0 0
    %512 = vmatprep.subr.bf16.mxu0 0
    %513 = vmatpush1.bf16.msra.mxu0 0
    %514 = vmatprep.subr.bf16.mxu0 0
    %515 = vmatpush1.bf16.msra.mxu0 0
    %516 = vmatprep.subr.bf16.mxu0 0
    %517 = vmatpush1.bf16.msra.mxu0 0
    %518 = vmatprep.subr.bf16.mxu0 0
    %519 = vmatpush1.bf16.msra.mxu0 0
    %520 = vmatprep.subr.bf16.mxu0 0
    %521 = vmatpush1.bf16.msra.mxu0 0
    %522 = vmatprep.subr.bf16.mxu0 0
    %523 = vmatpush1.bf16.msra.mxu0 0
    %524 = vmatprep.mubr.bf16.mxu0 0
    %525 = vmatmul.mubr.bf16.gmra.mrb[0].mxu0 %v383
    %v526 = vpop.f32.mrb[0].mxu0
    %v527 = vadd.f32 %v405, %v526
    %v528 = vpop.f32.mrb[0].mxu0
    %v529 = vadd.f32 %v409, %v528
    %v530 = vpop.f32.mrb[0].mxu0
    %v531 = vpop.f32.mrb[0].mxu0
    %532 = vdwg.mxu0
    %v533 = vld [vmem:[#allocation5] sm:$0xff]
    %v534 = vmul.f32 %v529, 0.5
    %v535 = vmul.f32 %v534, 1.442695
    %v536 = vpow.pop %v535
    %v537 = vmul.f32 %v533, %v536
    %v538 = vadd.f32 %v527, %v537
    %v539 = vpack.c.bf16 %v538, %v538
    %v540 = vld [vmem:[#allocation11] sm:$0xf]
    %v541 = vld [vmem:[#allocation11 + $0x4] sm:$0xf]
    %v542 = vld [vmem:[#allocation11 + $0x8] sm:$0xf]
    %v543 = vld [vmem:[#allocation11 + $0xc] sm:$0xf]
    %v544 = vld [vmem:[#allocation11 + $0x10] sm:$0xf]
    %v545 = vld [vmem:[#allocation11 + $0x14] sm:$0xf]
    %v546 = vld [vmem:[#allocation11 + $0x18] sm:$0xf]
    %v547 = vld [vmem:[#allocation11 + $0x1c] sm:$0xf]
    %v548 = vld [vmem:[#allocation11 + $0x20] sm:$0xf]
    %v549 = vld [vmem:[#allocation11 + $0x24] sm:$0xf]
    %v550 = vld [vmem:[#allocation11 + $0x28] sm:$0xf]
    %v551 = vld [vmem:[#allocation11 + $0x2c] sm:$0xf]
    %v552 = vld [vmem:[#allocation11 + $0x30] sm:$0xf]
    %v553 = vld [vmem:[#allocation11 + $0x34] sm:$0xf]
    %v554 = vld [vmem:[#allocation11 + $0x38] sm:$0xf]
    %v555 = vld [vmem:[#allocation11 + $0x3c] sm:$0xf]
    %v556 = vld [vmem:[%s9] sm:$0x1]
    %v558 = vlaneseq
    %v559 = vshrl.u32 %v558, 7
    %v560 = vsub.s32 0, %v559
    %v561 = vrot.slane %v556, %v560
    %v579 = vunpack.c.l.b16 %v540
    %v580 = vunpack.c.l.b16 %v541
    %v581 = vunpack.c.l.b16 %v542
    %v582 = vunpack.c.l.b16 %v543
    %v583 = vunpack.c.l.b16 %v544
    %v584 = vunpack.c.l.b16 %v545
    %v585 = vunpack.c.l.b16 %v546
    %v586 = vunpack.c.l.b16 %v547
    %v587 = vunpack.c.l.b16 %v548
    %v588 = vunpack.c.l.b16 %v549
    %v589 = vunpack.c.l.b16 %v550
    %v590 = vunpack.c.l.b16 %v551
    %v591 = vunpack.c.l.b16 %v552
    %v592 = vunpack.c.l.b16 %v553
    %v593 = vunpack.c.l.b16 %v554
    %v594 = vunpack.c.l.b16 %v555
    %v595 = vpack.c.b16 %v580, %v579
    %v596 = vpack.c.b16 %v582, %v581
    %v597 = vpack.c.b16 %v584, %v583
    %v598 = vpack.c.b16 %v586, %v585
    %v599 = vpack.c.b16 %v588, %v587
    %v600 = vpack.c.b16 %v590, %v589
    %v601 = vpack.c.b16 %v592, %v591
    %v602 = vpack.c.b16 %v594, %v593
    %611 = vmatprep.subr.bf16.mxu0 0
    %612 = vmatpush1.bf16.msra.mxu0 %v595
    %613 = vmatprep.subr.bf16.mxu0 0
    %614 = vmatpush1.bf16.msra.mxu0 %v596
    %615 = vmatprep.subr.bf16.mxu0 0
    %616 = vmatpush1.bf16.msra.mxu0 %v597
    %617 = vmatprep.subr.bf16.mxu0 0
    %618 = vmatpush1.bf16.msra.mxu0 %v598
    %619 = vmatprep.subr.bf16.mxu0 0
    %620 = vmatpush1.bf16.msra.mxu0 %v599
    %621 = vmatprep.subr.bf16.mxu0 0
    %622 = vmatpush1.bf16.msra.mxu0 %v600
    %623 = vmatprep.subr.bf16.mxu0 0
    %624 = vmatpush1.bf16.msra.mxu0 %v601
    %625 = vmatprep.subr.bf16.mxu0 0
    %626 = vmatpush1.bf16.msra.mxu0 %v602
    %627 = vmatprep.subr.bf16.mxu0 0
    %628 = vmatpush1.bf16.msra.mxu0 0
    %629 = vmatprep.subr.bf16.mxu0 0
    %630 = vmatpush1.bf16.msra.mxu0 0
    %631 = vmatprep.subr.bf16.mxu0 0
    %632 = vmatpush1.bf16.msra.mxu0 0
    %633 = vmatprep.subr.bf16.mxu0 0
    %634 = vmatpush1.bf16.msra.mxu0 0
    %635 = vmatprep.subr.bf16.mxu0 0
    %636 = vmatpush1.bf16.msra.mxu0 0
    %637 = vmatprep.subr.bf16.mxu0 0
    %638 = vmatpush1.bf16.msra.mxu0 0
    %639 = vmatprep.subr.bf16.mxu0 0
    %640 = vmatpush1.bf16.msra.mxu0 0
    %641 = vmatprep.subr.bf16.mxu0 0
    %642 = vmatpush1.bf16.msra.mxu0 0
    %643 = vmatprep.mubr.bf16.mxu0 0
    %644 = vmatmul.mubr.bf16.gmra.mrb[0].mxu0 %v539
    %v645 = vpop.f32.mrb[0].mxu0
    %v646 = vadd.f32 %v561, %v645
    %v647 = vpop.f32.mrb[0].mxu0
    %v648 = vpop.f32.mrb[0].mxu0
    %v649 = vpop.f32.mrb[0].mxu0
    %650 = vdwg.mxu0
    %v651 = vmax.f32 %v646, 0.0
    %v652 = vpack.c.bf16 %v651, %v651
    %v653 = vld [vmem:[#allocation13] sm:$0xf]
    %v654 = vld [vmem:[#allocation13 + $0x4] sm:$0xf]
    %v655 = vld [vmem:[#allocation13 + $0x8] sm:$0xf]
    %v656 = vld [vmem:[#allocation13 + $0xc] sm:$0xf]
    %v657 = vld [vmem:[#allocation13 + $0x10] sm:$0xf]
    %v658 = vld [vmem:[#allocation13 + $0x14] sm:$0xf]
    %v659 = vld [vmem:[#allocation13 + $0x18] sm:$0xf]
    %v660 = vld [vmem:[#allocation13 + $0x1c] sm:$0xf]
    %v661 = vld [vmem:[#allocation13 + $0x20] sm:$0xf]
    %v662 = vld [vmem:[#allocation13 + $0x24] sm:$0xf]
    %v663 = vld [vmem:[#allocation13 + $0x28] sm:$0xf]
    %v664 = vld [vmem:[#allocation13 + $0x2c] sm:$0xf]
    %v665 = vld [vmem:[#allocation13 + $0x30] sm:$0xf]
    %v666 = vld [vmem:[#allocation13 + $0x34] sm:$0xf]
    %v667 = vld [vmem:[#allocation13 + $0x38] sm:$0xf]
    %v668 = vld [vmem:[#allocation13 + $0x3c] sm:$0xf]
    %v669 = vld [vmem:[%s11] sm:$0x1]
    %v671 = vlaneseq
    %v672 = vshrl.u32 %v671, 7
    %v673 = vsub.s32 0, %v672
    %v674 = vrot.slane %v669, %v673
    %v692 = vunpack.c.l.b16 %v653
    %v693 = vunpack.c.l.b16 %v654
    %v694 = vunpack.c.l.b16 %v655
    %v695 = vunpack.c.l.b16 %v656
    %v696 = vunpack.c.l.b16 %v657
    %v697 = vunpack.c.l.b16 %v658
    %v698 = vunpack.c.l.b16 %v659
    %v699 = vunpack.c.l.b16 %v660
    %v700 = vunpack.c.l.b16 %v661
    %v701 = vunpack.c.l.b16 %v662
    %v702 = vunpack.c.l.b16 %v663
    %v703 = vunpack.c.l.b16 %v664
    %v704 = vunpack.c.l.b16 %v665
    %v705 = vunpack.c.l.b16 %v666
    %v706 = vunpack.c.l.b16 %v667
    %v707 = vunpack.c.l.b16 %v668
    %v708 = vpack.c.b16 %v693, %v692
    %v709 = vpack.c.b16 %v695, %v694
    %v710 = vpack.c.b16 %v697, %v696
    %v711 = vpack.c.b16 %v699, %v698
    %v712 = vpack.c.b16 %v701, %v700
    %v713 = vpack.c.b16 %v703, %v702
    %v714 = vpack.c.b16 %v705, %v704
    %v715 = vpack.c.b16 %v707, %v706
    %724 = vmatprep.subr.bf16.mxu0 0
    %725 = vmatpush1.bf16.msra.mxu0 %v708
    %726 = vmatprep.subr.bf16.mxu0 0
    %727 = vmatpush1.bf16.msra.mxu0 %v709
    %728 = vmatprep.subr.bf16.mxu0 0
    %729 = vmatpush1.bf16.msra.mxu0 %v710
    %730 = vmatprep.subr.bf16.mxu0 0
    %731 = vmatpush1.bf16.msra.mxu0 %v711
    %732 = vmatprep.subr.bf16.mxu0 0
    %733 = vmatpush1.bf16.msra.mxu0 %v712
    %734 = vmatprep.subr.bf16.mxu0 0
    %735 = vmatpush1.bf16.msra.mxu0 %v713
    %736 = vmatprep.subr.bf16.mxu0 0
    %737 = vmatpush1.bf16.msra.mxu0 %v714
    %738 = vmatprep.subr.bf16.mxu0 0
    %739 = vmatpush1.bf16.msra.mxu0 %v715
    %740 = vmatprep.subr.bf16.mxu0 0
    %741 = vmatpush1.bf16.msra.mxu0 0
    %742 = vmatprep.subr.bf16.mxu0 0
    %743 = vmatpush1.bf16.msra.mxu0 0
    %744 = vmatprep.subr.bf16.mxu0 0
    %745 = vmatpush1.bf16.msra.mxu0 0
    %746 = vmatprep.subr.bf16.mxu0 0
    %747 = vmatpush1.bf16.msra.mxu0 0
    %748 = vmatprep.subr.bf16.mxu0 0
    %749 = vmatpush1.bf16.msra.mxu0 0
    %750 = vmatprep.subr.bf16.mxu0 0
    %751 = vmatpush1.bf16.msra.mxu0 0
    %752 = vmatprep.subr.bf16.mxu0 0
    %753 = vmatpush1.bf16.msra.mxu0 0
    %754 = vmatprep.subr.bf16.mxu0 0
    %755 = vmatpush1.bf16.msra.mxu0 0
    %756 = vmatprep.mubr.bf16.mxu0 0
    %757 = vmatmul.mubr.bf16.gmra.mrb[0].mxu0 %v652
    %v758 = vpop.f32.mrb[0].mxu0
    %v759 = vadd.f32 %v674, %v758
    %v760 = vpop.f32.mrb[0].mxu0
    %v761 = vpop.f32.mrb[0].mxu0
    %v762 = vpop.f32.mrb[0].mxu0
    %763 = vdwg.mxu0
    %v764 = vmax.f32 %v759, 0.0
    %v765 = vpack.c.bf16 %v764, %v764
    %v766 = vld [vmem:[#allocation14] sm:$0xf]
    %v767 = vld [vmem:[#allocation14 + $0x4] sm:$0xf]
    %v768 = vld [vmem:[#allocation14 + $0x8] sm:$0xf]
    %v769 = vld [vmem:[#allocation14 + $0xc] sm:$0xf]
    %v770 = vld [vmem:[#allocation14 + $0x10] sm:$0xf]
    %v771 = vld [vmem:[#allocation14 + $0x14] sm:$0xf]
    %v772 = vld [vmem:[#allocation14 + $0x18] sm:$0xf]
    %v773 = vld [vmem:[#allocation14 + $0x1c] sm:$0xf]
    %v774 = vld [vmem:[#allocation14 + $0x20] sm:$0xf]
    %v775 = vld [vmem:[#allocation14 + $0x24] sm:$0xf]
    %v776 = vld [vmem:[#allocation14 + $0x28] sm:$0xf]
    %v777 = vld [vmem:[#allocation14 + $0x2c] sm:$0xf]
    %v778 = vld [vmem:[#allocation14 + $0x30] sm:$0xf]
    %v779 = vld [vmem:[#allocation14 + $0x34] sm:$0xf]
    %v780 = vld [vmem:[#allocation14 + $0x38] sm:$0xf]
    %v781 = vld [vmem:[#allocation14 + $0x3c] sm:$0xf]
    %v782 = vld [vmem:[%s13] sm:$0x1]
    %v784 = vlaneseq
    %v785 = vshrl.u32 %v784, 7
    %v786 = vsub.s32 0, %v785
    %v787 = vrot.slane %v782, %v786
    %v805 = vunpack.c.l.b16 %v766
    %v806 = vunpack.c.l.b16 %v767
    %v807 = vunpack.c.l.b16 %v768
    %v808 = vunpack.c.l.b16 %v769
    %v809 = vunpack.c.l.b16 %v770
    %v810 = vunpack.c.l.b16 %v771
    %v811 = vunpack.c.l.b16 %v772
    %v812 = vunpack.c.l.b16 %v773
    %v813 = vunpack.c.l.b16 %v774
    %v814 = vunpack.c.l.b16 %v775
    %v815 = vunpack.c.l.b16 %v776
    %v816 = vunpack.c.l.b16 %v777
    %v817 = vunpack.c.l.b16 %v778
    %v818 = vunpack.c.l.b16 %v779
    %v819 = vunpack.c.l.b16 %v780
    %v820 = vunpack.c.l.b16 %v781
    %v821 = vpack.c.b16 %v806, %v805
    %v822 = vpack.c.b16 %v808, %v807
    %v823 = vpack.c.b16 %v810, %v809
    %v824 = vpack.c.b16 %v812, %v811
    %v825 = vpack.c.b16 %v814, %v813
    %v826 = vpack.c.b16 %v816, %v815
    %v827 = vpack.c.b16 %v818, %v817
    %v828 = vpack.c.b16 %v820, %v819
    %837 = vmatprep.subr.bf16.mxu0 0
    %838 = vmatpush1.bf16.msra.mxu0 %v821
    %839 = vmatprep.subr.bf16.mxu0 0
    %840 = vmatpush1.bf16.msra.mxu0 %v822
    %841 = vmatprep.subr.bf16.mxu0 0
    %842 = vmatpush1.bf16.msra.mxu0 %v823
    %843 = vmatprep.subr.bf16.mxu0 0
    %844 = vmatpush1.bf16.msra.mxu0 %v824
    %845 = vmatprep.subr.bf16.mxu0 0
    %846 = vmatpush1.bf16.msra.mxu0 %v825
    %847 = vmatprep.subr.bf16.mxu0 0
    %848 = vmatpush1.bf16.msra.mxu0 %v826
    %849 = vmatprep.subr.bf16.mxu0 0
    %850 = vmatpush1.bf16.msra.mxu0 %v827
    %851 = vmatprep.subr.bf16.mxu0 0
    %852 = vmatpush1.bf16.msra.mxu0 %v828
    %853 = vmatprep.subr.bf16.mxu0 0
    %854 = vmatpush1.bf16.msra.mxu0 0
    %855 = vmatprep.subr.bf16.mxu0 0
    %856 = vmatpush1.bf16.msra.mxu0 0
    %857 = vmatprep.subr.bf16.mxu0 0
    %858 = vmatpush1.bf16.msra.mxu0 0
    %859 = vmatprep.subr.bf16.mxu0 0
    %860 = vmatpush1.bf16.msra.mxu0 0
    %861 = vmatprep.subr.bf16.mxu0 0
    %862 = vmatpush1.bf16.msra.mxu0 0
    %863 = vmatprep.subr.bf16.mxu0 0
    %864 = vmatpush1.bf16.msra.mxu0 0
    %865 = vmatprep.subr.bf16.mxu0 0
    %866 = vmatpush1.bf16.msra.mxu0 0
    %867 = vmatprep.subr.bf16.mxu0 0
    %868 = vmatpush1.bf16.msra.mxu0 0
    %869 = vmatprep.mubr.bf16.mxu0 0
    %870 = vmatmul.mubr.bf16.gmra.mrb[0].mxu0 %v765
    %v871 = vpop.f32.mrb[0].mxu0
    %v872 = vadd.f32 %v787, %v871
    %v873 = vpop.f32.mrb[0].mxu0
    %v874 = vpop.f32.mrb[0].mxu0
    %v875 = vpop.f32.mrb[0].mxu0
    %876 = vdwg.mxu0
    %v877 = vpack.c.bf16 %v872, %v872
    %878 = vst [vmem:[#allocation16] sm:$0xf] %v877
    %879 = vst [vmem:[#allocation17] sm:$0xff] %v527
    %880 = vst [vmem:[#allocation17 + $0x8] sm:$0xff] %v529
    // Predicated region
    $region90: #{tpu_custom_call.1} parent=1 // pred_check
      _
    $region91: #{tpu_custom_call.1} parent=1 // pred_check_branch
      %882 = sbr.rel (0) target = $region93
    $region92: #{tpu_custom_call.1} parent=1 // pred_region
      %s884 = ssub.s32 64, 64
      %885 = vsyncadd [#allocation4], %s884
      %s887 = sshll.u32 [#allocation16], 4
      %s888 = int_to_ptr.vmem [resolvable:$true] %s887
      %890 = dma.vmem_to_hbm [thread:$0]  %s888, 64, %s14, [#allocation4]
    $region93: #{tpu_custom_call.1} parent=1 // pred_fallthru
      _
    // Predicated region
    $region94: #{tpu_custom_call.1} parent=1 // pred_check
      _
    $region95: #{tpu_custom_call.1} parent=1 // pred_check_branch
      %892 = sbr.rel (0) target = $region97
    $region96: #{tpu_custom_call.1} parent=1 // pred_region
      %s894 = ssub.s32 256, 256
      %895 = vsyncadd [#allocation18], %s894
      %s897 = sshll.u32 [#allocation17], 4
      %s898 = int_to_ptr.vmem [resolvable:$true] %s897
      %900 = dma.vmem_to_hbm [thread:$0]  %s898, 256, %s15, [#allocation18]
    $region97: #{tpu_custom_call.1} parent=1 // pred_fallthru
      _
    // Predicated region
    $region98: #{tpu_custom_call.1} parent=1 // pred_check
      _
    $region99: #{tpu_custom_call.1} parent=1 // pred_check_branch
      %902 = sbr.rel (0) target = $region101
    $region100: #{tpu_custom_call.1} parent=1 // pred_region
      %903 = dma.done [#allocation4], 64
    $region101: #{tpu_custom_call.1} parent=1 // pred_fallthru
      _
    // Predicated region
    $region102: #{tpu_custom_call.1} parent=1 // pred_check
      _
    $region103: #{tpu_custom_call.1} parent=1 // pred_check_branch
      %905 = sbr.rel (0) target = $region105
    $region104: #{tpu_custom_call.1} parent=1 // pred_region
      %906 = dma.done [#allocation18], 256
    $region105: #{tpu_custom_call.1} parent=1 // pred_fallthru
      _
    %907 = vsyncpa [#allocation3], 1
    %908 = vsyncpa [#allocation6], 1
    %909 = vsyncpa [#allocation9], 1
    %910 = vsyncpa [#allocation12], 1
    %911 = vsyncpa [#allocation15], 1
    %912 = vsyncpa [#allocation4], 1
    %913 = vsyncpa [#allocation18], 1

// kernel: tpu_custom_call.1
$region0: #{tpu_custom_call.1}
  #allocation0 [shape = 'u32[]', space=smem, size = 0x4, offset = 0x4, fixed_abs, tag = 'smem constant byte address 0x4 - core index']
  #allocation1 [shape = 'u32[144,128]{1,0:T(1,128)}', space=vmem, size = 0x12000, scoped, tag = 'internal scratch']
  %s0 = inlined_call_operand.hbm [shape: bf16[8,128], index: 0, kind: input, shape index: {}]
  %s1 = inlined_call_operand.hbm [shape: f32[8,128], index: 1, kind: input, shape index: {}]
  %s2 = inlined_call_operand.hbm [shape: bf16[128,128], index: 2, kind: input, shape index: {}]
  %s3 = inlined_call_operand.vmem [shape: f32[1,128], index: 3, kind: input, shape index: {}]
  %s4 = inlined_call_operand.hbm [shape: bf16[128,128], index: 4, kind: input, shape index: {}]
  %s5 = inlined_call_operand.vmem [shape: f32[1,128], index: 5, kind: input, shape index: {}]
  %s6 = inlined_call_operand.hbm [shape: bf16[128,256], index: 6, kind: input, shape index: {}]
  %s7 = inlined_call_operand.vmem [shape: f32[1,256], index: 7, kind: input, shape index: {}]
  %s8 = inlined_call_operand.hbm [shape: bf16[128,128], index: 8, kind: input, shape index: {}]
  %s9 = inlined_call_operand.vmem [shape: f32[1,128], index: 9, kind: input, shape index: {}]
  %s10 = inlined_call_operand.hbm [shape: bf16[128,128], index: 10, kind: input, shape index: {}]
  %s11 = inlined_call_operand.vmem [shape: f32[1,128], index: 11, kind: input, shape index: {}]
  %s12 = inlined_call_operand.hbm [shape: bf16[128,128], index: 12, kind: input, shape index: {}]
  %s13 = inlined_call_operand.vmem [shape: f32[1,128], index: 13, kind: input, shape index: {}]
  %s14 = inlined_call_operand.hbm [shape: bf16[8,128], index: 14, kind: output, shape index: {0}]
  %s15 = inlined_call_operand.hbm [shape: f32[8,256], index: 15, kind: output, shape index: {1}]
  %16 = xla_tuple %s14, %s15
  %s17 = sld [smem:[#allocation0]]
  $region106: #{tpu_custom_call.1} parent=0
    _
  %s19 = ssub.s32 1, %s17
  %s20 = scalar_select 0, %s19, %s17
  $region1: #{tpu_custom_call.1} parent=0
    #allocation2 [shape = 'u8[2048]{0}', space=vmem, size = 0x800, scoped, tag = 'input window, operand 0, single buffered']
    #allocation3 [shape = 's32[1]{0}', space=sflag, size = 0x4, scoped, tag = 'scoped memory for tpu_custom_call.1']
    #allocation4 [shape = 's32[1]{0}', space=sflag, size = 0x4, scoped, tag = 'scoped memory for tpu_custom_call.1']
    #allocation5 [shape = 'u8[4096]{0}', space=vmem, size = 0x1000, scoped, tag = 'input window, operand 1, single buffered']
    #allocation6 [shape = 's32[1]{0}', space=sflag, size = 0x4, scoped, tag = 'scoped memory for tpu_custom_call.1']
    #allocation7 [shape = 'u8[32768]{0}', space=vmem, size = 0x8000, scoped, tag = 'input window, operand 2, single buffered']
    #allocation8 [shape = 'u8[32768]{0}', space=vmem, size = 0x8000, scoped, tag = 'input window, operand 4, single buffered']
    #allocation9 [shape = 's32[1]{0}', space=sflag, size = 0x4, scoped, tag = 'scoped memory for tpu_custom_call.1']
    #allocation10 [shape = 'u8[65536]{0}', space=vmem, size = 0x10000, scoped, tag = 'input window, operand 6, single buffered']
    #allocation11 [shape = 'u8[32768]{0}', space=vmem, size = 0x8000, scoped, tag = 'input window, operand 8, single buffered']
    #allocation12 [shape = 's32[1]{0}', space=sflag, size = 0x4, scoped, tag = 'scoped memory for tpu_custom_call.1']
    #allocation13 [shape = 'u8[32768]{0}', space=vmem, size = 0x8000, scoped, tag = 'input window, operand 10, single buffered']
    #allocation14 [shape = 'u8[32768]{0}', space=vmem, size = 0x8000, scoped, tag = 'input window, operand 12, single buffered']
    #allocation15 [shape = 's32[1]{0}', space=sflag, size = 0x4, scoped, tag = 'scoped memory for tpu_custom_call.1']
    #allocation16 [shape = 'u8[2048]{0}', space=vmem, size = 0x800, scoped, tag = 'output window, operand 0, single buffered']
    #allocation17 [shape = 'u8[8192]{0}', space=vmem, size = 0x2000, scoped, tag = 'output window, operand 1, single buffered']
    #allocation18 [shape = 's32[1]{0}', space=sflag, size = 0x4, scoped, tag = 'scoped memory for tpu_custom_call.1']
    %21 = vsyncpa [#allocation3], 0
    %22 = vsyncpa [#allocation6], 0
    %23 = vsyncpa [#allocation9], 0
    %24 = vsyncpa [#allocation12], 0
    %25 = vsyncpa [#allocation15], 0
    %26 = vsyncpa [#allocation4], 0
    %27 = vsyncpa [#allocation18], 0
    // Predicated region
    $region2: #{tpu_custom_call.1} parent=1 // pred_check
      _
    $region3: #{tpu_custom_call.1} parent=1 // pred_check_branch
      %29 = sbr.rel (0) target = $region5
    $region4: #{tpu_custom_call.1} parent=1 // pred_region
      %s31 = ssub.s32 64, 64
      %32 = vsyncadd [#allocation3], %s31
      %s34 = sshll.u32 [#allocation2], 4
      %s35 = int_to_ptr.vmem [resolvable:$true] %s34
      %37 = dma.hbm_to_vmem [thread:$0]  %s0, 64, %s35, [#allocation3]
    $region5: #{tpu_custom_call.1} parent=1 // pred_fallthru
      _
    // Predicated region
    $region6: #{tpu_custom_call.1} parent=1 // pred_check
      _
    $region7: #{tpu_custom_call.1} parent=1 // pred_check_branch
      %39 = sbr.rel (0) target = $region9
    $region8: #{tpu_custom_call.1} parent=1 // pred_region
      %s41 = ssub.s32 128, 128
      %42 = vsyncadd [#allocation6], %s41
      %s44 = sshll.u32 [#allocation5], 4
      %s45 = int_to_ptr.vmem [resolvable:$true] %s44
      %47 = dma.hbm_to_vmem [thread:$0]  %s1, 128, %s45, [#allocation6]
    $region9: #{tpu_custom_call.1} parent=1 // pred_fallthru
      _
    // Predicated region
    $region10: #{tpu_custom_call.1} parent=1 // pred_check
      _
    $region11: #{tpu_custom_call.1} parent=1 // pred_check_branch
      %49 = sbr.rel (0) target = $region13
    $region12: #{tpu_custom_call.1} parent=1 // pred_region
      %s51 = ssub.s32 1024, 1024
      %52 = vsyncadd [#allocation6], %s51
      %s53 = sshll.u32 [#allocation7], 4
      %s54 = int_to_ptr.vmem [resolvable:$true] %s53
      %59 = dma.hbm_to_vmem [thread:$0]  %s2, 1024, %s54, [#allocation6], 64, 64, 4
    $region13: #{tpu_custom_call.1} parent=1 // pred_fallthru
      _
    // Predicated region
    $region14: #{tpu_custom_call.1} parent=1 // pred_check
      _
    $region15: #{tpu_custom_call.1} parent=1 // pred_check_branch
      %61 = sbr.rel (0) target = $region17
    $region16: #{tpu_custom_call.1} parent=1 // pred_region
      _
    $region17: #{tpu_custom_call.1} parent=1 // pred_fallthru
      _
    // Predicated region
    $region18: #{tpu_custom_call.1} parent=1 // pred_check
      _
    $region19: #{tpu_custom_call.1} parent=1 // pred_check_branch
      %63 = sbr.rel (0) target = $region21
    $region20: #{tpu_custom_call.1} parent=1 // pred_region
      %s65 = ssub.s32 1024, 1024
      %66 = vsyncadd [#allocation9], %s65
      %s67 = sshll.u32 [#allocation8], 4
      %s68 = int_to_ptr.vmem [resolvable:$true] %s67
      %73 = dma.hbm_to_vmem [thread:$0]  %s4, 1024, %s68, [#allocation9], 64, 64, 4
    $region21: #{tpu_custom_call.1} parent=1 // pred_fallthru
      _
    // Predicated region
    $region22: #{tpu_custom_call.1} parent=1 // pred_check
      _
    $region23: #{tpu_custom_call.1} parent=1 // pred_check_branch
      %75 = sbr.rel (0) target = $region25
    $region24: #{tpu_custom_call.1} parent=1 // pred_region
      _
    $region25: #{tpu_custom_call.1} parent=1 // pred_fallthru
      _
    // Predicated region
    $region26: #{tpu_custom_call.1} parent=1 // pred_check
      _
    $region27: #{tpu_custom_call.1} parent=1 // pred_check_branch
      %77 = sbr.rel (0) target = $region29
    $region28: #{tpu_custom_call.1} parent=1 // pred_region
      %s79 = ssub.s32 2048, 2048
      %80 = vsyncadd [#allocation9], %s79
      %s81 = sshll.u32 [#allocation10], 4
      %s82 = int_to_ptr.vmem [resolvable:$true] %s81
      %87 = dma.hbm_to_vmem [thread:$0]  %s6, 2048, %s82, [#allocation9], 128, 128, 8
    $region29: #{tpu_custom_call.1} parent=1 // pred_fallthru
      _
    // Predicated region
    $region30: #{tpu_custom_call.1} parent=1 // pred_check
      _
    $region31: #{tpu_custom_call.1} parent=1 // pred_check_branch
      %89 = sbr.rel (0) target = $region33
    $region32: #{tpu_custom_call.1} parent=1 // pred_region
      _
    $region33: #{tpu_custom_call.1} parent=1 // pred_fallthru
      _
    // Predicated region
    $region34: #{tpu_custom_call.1} parent=1 // pred_check
      _
    $region35: #{tpu_custom_call.1} parent=1 // pred_check_branch
      %91 = sbr.rel (0) target = $region37
    $region36: #{tpu_custom_call.1} parent=1 // pred_region
      %s93 = ssub.s32 1024, 1024
      %94 = vsyncadd [#allocation12], %s93
      %s95 = sshll.u32 [#allocation11], 4
      %s96 = int_to_ptr.vmem [resolvable:$true] %s95
      %101 = dma.hbm_to_vmem [thread:$0]  %s8, 1024, %s96, [#allocation12], 64, 64, 4
    $region37: #{tpu_custom_call.1} parent=1 // pred_fallthru
      _
    // Predicated region
    $region38: #{tpu_custom_call.1} parent=1 // pred_check
      _
    $region39: #{tpu_custom_call.1} parent=1 // pred_check_branch
      %103 = sbr.rel (0) target = $region41
    $region40: #{tpu_custom_call.1} parent=1 // pred_region
      _
    $region41: #{tpu_custom_call.1} parent=1 // pred_fallthru
      _
    // Predicated region
    $region42: #{tpu_custom_call.1} parent=1 // pred_check
      _
    $region43: #{tpu_custom_call.1} parent=1 // pred_check_branch
      %105 = sbr.rel (0) target = $region45
    $region44: #{tpu_custom_call.1} parent=1 // pred_region
      %s107 = ssub.s32 1024, 1024
      %108 = vsyncadd [#allocation12], %s107
      %s109 = sshll.u32 [#allocation13], 4
      %s110 = int_to_ptr.vmem [resolvable:$true] %s109
      %115 = dma.hbm_to_vmem [thread:$0]  %s10, 1024, %s110, [#allocation12], 64, 64, 4
    $region45: #{tpu_custom_call.1} parent=1 // pred_fallthru
      _
    // Predicated region
    $region46: #{tpu_custom_call.1} parent=1 // pred_check
      _
    $region47: #{tpu_custom_call.1} parent=1 // pred_check_branch
      %117 = sbr.rel (0) target = $region49
    $region48: #{tpu_custom_call.1} parent=1 // pred_region
      _
    $region49: #{tpu_custom_call.1} parent=1 // pred_fallthru
      _
    // Predicated region
    $region50: #{tpu_custom_call.1} parent=1 // pred_check
      _
    $region51: #{tpu_custom_call.1} parent=1 // pred_check_branch
      %119 = sbr.rel (0) target = $region53
    $region52: #{tpu_custom_call.1} parent=1 // pred_region
      %s121 = ssub.s32 1024, 1024
      %122 = vsyncadd [#allocation15], %s121
      %s123 = sshll.u32 [#allocation14], 4
      %s124 = int_to_ptr.vmem [resolvable:$true] %s123
      %129 = dma.hbm_to_vmem [thread:$0]  %s12, 1024, %s124, [#allocation15], 64, 64, 4
    $region53: #{tpu_custom_call.1} parent=1 // pred_fallthru
      _
    // Predicated region
    $region54: #{tpu_custom_call.1} parent=1 // pred_check
      _
    $region55: #{tpu_custom_call.1} parent=1 // pred_check_branch
      %131 = sbr.rel (0) target = $region57
    $region56: #{tpu_custom_call.1} parent=1 // pred_region
      _
    $region57: #{tpu_custom_call.1} parent=1 // pred_fallthru
      _
    // Predicated region
    $region58: #{tpu_custom_call.1} parent=1 // pred_check
      _
    $region59: #{tpu_custom_call.1} parent=1 // pred_check_branch
      %133 = sbr.rel (0) target = $region61
    $region60: #{tpu_custom_call.1} parent=1 // pred_region
      %134 = dma.done [#allocation3], 64
    $region61: #{tpu_custom_call.1} parent=1 // pred_fallthru
      _
    // Predicated region
    $region62: #{tpu_custom_call.1} parent=1 // pred_check
      _
    $region63: #{tpu_custom_call.1} parent=1 // pred_check_branch
      %136 = sbr.rel (0) target = $region65
    $region64: #{tpu_custom_call.1} parent=1 // pred_region
      %137 = dma.done [#allocation6], 128
    $region65: #{tpu_custom_call.1} parent=1 // pred_fallthru
      _
    // Predicated region
    $region66: #{tpu_custom_call.1} parent=1 // pred_check
      _
    $region67: #{tpu_custom_call.1} parent=1 // pred_check_branch
      %139 = sbr.rel (0) target = $region69
    $region68: #{tpu_custom_call.1} parent=1 // pred_region
      %140 = dma.done [#allocation6], 1024
    $region69: #{tpu_custom_call.1} parent=1 // pred_fallthru
      _
    // Predicated region
    $region70: #{tpu_custom_call.1} parent=1 // pred_check
      _
    $region71: #{tpu_custom_call.1} parent=1 // pred_check_branch
      %142 = sbr.rel (0) target = $region73
    $region72: #{tpu_custom_call.1} parent=1 // pred_region
      %143 = dma.done [#allocation9], 1024
    $region73: #{tpu_custom_call.1} parent=1 // pred_fallthru
      _
    // Predicated region
    $region74: #{tpu_custom_call.1} parent=1 // pred_check
      _
    $region75: #{tpu_custom_call.1} parent=1 // pred_check_branch
      %145 = sbr.rel (0) target = $region77
    $region76: #{tpu_custom_call.1} parent=1 // pred_region
      %146 = dma.done [#allocation9], 2048
    $region77: #{tpu_custom_call.1} parent=1 // pred_fallthru
      _
    // Predicated region
    $region78: #{tpu_custom_call.1} parent=1 // pred_check
      _
    $region79: #{tpu_custom_call.1} parent=1 // pred_check_branch
      %148 = sbr.rel (0) target = $region81
    $region80: #{tpu_custom_call.1} parent=1 // pred_region
      %149 = dma.done [#allocation12], 1024
    $region81: #{tpu_custom_call.1} parent=1 // pred_fallthru
      _
    // Predicated region
    $region82: #{tpu_custom_call.1} parent=1 // pred_check
      _
    $region83: #{tpu_custom_call.1} parent=1 // pred_check_branch
      %151 = sbr.rel (0) target = $region85
    $region84: #{tpu_custom_call.1} parent=1 // pred_region
      %152 = dma.done [#allocation12], 1024
    $region85: #{tpu_custom_call.1} parent=1 // pred_fallthru
      _
    // Predicated region
    $region86: #{tpu_custom_call.1} parent=1 // pred_check
      _
    $region87: #{tpu_custom_call.1} parent=1 // pred_check_branch
      %154 = sbr.rel (0) target = $region89
    $region88: #{tpu_custom_call.1} parent=1 // pred_region
      %155 = dma.done [#allocation15], 1024
    $region89: #{tpu_custom_call.1} parent=1 // pred_fallthru
      _
    %v157 = vld [vmem:[#allocation2] sm:$0xf]
    %v158 = vld [vmem:[#allocation7] sm:$0xf]
    %v159 = vld [vmem:[#allocation7 + $0x4] sm:$0xf]
    %v160 = vld [vmem:[#allocation7 + $0x8] sm:$0xf]
    %v161 = vld [vmem:[#allocation7 + $0xc] sm:$0xf]
    %v162 = vld [vmem:[#allocation7 + $0x10] sm:$0xf]
    %v163 = vld [vmem:[#allocation7 + $0x14] sm:$0xf]
    %v164 = vld [vmem:[#allocation7 + $0x18] sm:$0xf]
    %v165 = vld [vmem:[#allocation7 + $0x1c] sm:$0xf]
    %v166 = vld [vmem:[#allocation7 + $0x20] sm:$0xf]
    %v167 = vld [vmem:[#allocation7 + $0x24] sm:$0xf]
    %v168 = vld [vmem:[#allocation7 + $0x28] sm:$0xf]
    %v169 = vld [vmem:[#allocation7 + $0x2c] sm:$0xf]
    %v170 = vld [vmem:[#allocation7 + $0x30] sm:$0xf]
    %v171 = vld [vmem:[#allocation7 + $0x34] sm:$0xf]
    %v172 = vld [vmem:[#allocation7 + $0x38] sm:$0xf]
    %v173 = vld [vmem:[#allocation7 + $0x3c] sm:$0xf]
    %v174 = vld [vmem:[%s3] sm:$0x1]
    %v176 = vlaneseq
    %v177 = vshrl.u32 %v176, 7
    %v178 = vsub.s32 0, %v177
    %v179 = vrot.slane %v174, %v178
    %v197 = vunpack.c.l.b16 %v158
    %v198 = vunpack.c.l.b16 %v159
    %v199 = vunpack.c.l.b16 %v160
    %v200 = vunpack.c.l.b16 %v161
    %v201 = vunpack.c.l.b16 %v162
    %v202 = vunpack.c.l.b16 %v163
    %v203 = vunpack.c.l.b16 %v164
    %v204 = vunpack.c.l.b16 %v165
    %v205 = vunpack.c.l.b16 %v166
    %v206 = vunpack.c.l.b16 %v167
    %v207 = vunpack.c.l.b16 %v168
    %v208 = vunpack.c.l.b16 %v169
    %v209 = vunpack.c.l.b16 %v170
    %v210 = vunpack.c.l.b16 %v171
    %v211 = vunpack.c.l.b16 %v172
    %v212 = vunpack.c.l.b16 %v173
    %v213 = vpack.c.b16 %v198, %v197
    %v214 = vpack.c.b16 %v200, %v199
    %v215 = vpack.c.b16 %v202, %v201
    %v216 = vpack.c.b16 %v204, %v203
    %v217 = vpack.c.b16 %v206, %v205
    %v218 = vpack.c.b16 %v208, %v207
    %v219 = vpack.c.b16 %v210, %v209
    %v220 = vpack.c.b16 %v212, %v211
    %229 = vmatprep.subr.bf16.mxu0 0
    %230 = vmatpush1.bf16.msra.mxu0 %v213
    %231 = vmatprep.subr.bf16.mxu0 0
    %232 = vmatpush1.bf16.msra.mxu0 %v214
    %233 = vmatprep.subr.bf16.mxu0 0
    %234 = vmatpush1.bf16.msra.mxu0 %v215
    %235 = vmatprep.subr.bf16.mxu0 0
    %236 = vmatpush1.bf16.msra.mxu0 %v216
    %237 = vmatprep.subr.bf16.mxu0 0
    %238 = vmatpush1.bf16.msra.mxu0 %v217
    %239 = vmatprep.subr.bf16.mxu0 0
    %240 = vmatpush1.bf16.msra.mxu0 %v218
    %241 = vmatprep.subr.bf16.mxu0 0
    %242 = vmatpush1.bf16.msra.mxu0 %v219
    %243 = vmatprep.subr.bf16.mxu0 0
    %244 = vmatpush1.bf16.msra.mxu0 %v220
    %245 = vmatprep.subr.bf16.mxu0 0
    %246 = vmatpush1.bf16.msra.mxu0 0
    %247 = vmatprep.subr.bf16.mxu0 0
    %248 = vmatpush1.bf16.msra.mxu0 0
    %249 = vmatprep.subr.bf16.mxu0 0
    %250 = vmatpush1.bf16.msra.mxu0 0
    %251 = vmatprep.subr.bf16.mxu0 0
    %252 = vmatpush1.bf16.msra.mxu0 0
    %253 = vmatprep.subr.bf16.mxu0 0
    %254 = vmatpush1.bf16.msra.mxu0 0
    %255 = vmatprep.subr.bf16.mxu0 0
    %256 = vmatpush1.bf16.msra.mxu0 0
    %257 = vmatprep.subr.bf16.mxu0 0
    %258 = vmatpush1.bf16.msra.mxu0 0
    %259 = vmatprep.subr.bf16.mxu0 0
    %260 = vmatpush1.bf16.msra.mxu0 0
    %261 = vmatprep.mubr.bf16.mxu0 0
    %262 = vmatmul.mubr.bf16.gmra.mrb[0].mxu0 %v157
    %v263 = vpop.f32.mrb[0].mxu0
    %v264 = vadd.f32 %v179, %v263
    %v265 = vpop.f32.mrb[0].mxu0
    %v266 = vpop.f32.mrb[0].mxu0
    %v267 = vpop.f32.mrb[0].mxu0
    %268 = vdwg.mxu0
    %v269 = vmax.f32 %v264, 0.0
    %v270 = vpack.c.bf16 %v269, %v269
    %v271 = vld [vmem:[#allocation8] sm:$0xf]
    %v272 = vld [vmem:[#allocation8 + $0x4] sm:$0xf]
    %v273 = vld [vmem:[#allocation8 + $0x8] sm:$0xf]
    %v274 = vld [vmem:[#allocation8 + $0xc] sm:$0xf]
    %v275 = vld [vmem:[#allocation8 + $0x10] sm:$0xf]
    %v276 = vld [vmem:[#allocation8 + $0x14] sm:$0xf]
    %v277 = vld [vmem:[#allocation8 + $0x18] sm:$0xf]
    %v278 = vld [vmem:[#allocation8 + $0x1c] sm:$0xf]
    %v279 = vld [vmem:[#allocation8 + $0x20] sm:$0xf]
    %v280 = vld [vmem:[#allocation8 + $0x24] sm:$0xf]
    %v281 = vld [vmem:[#allocation8 + $0x28] sm:$0xf]
    %v282 = vld [vmem:[#allocation8 + $0x2c] sm:$0xf]
    %v283 = vld [vmem:[#allocation8 + $0x30] sm:$0xf]
    %v284 = vld [vmem:[#allocation8 + $0x34] sm:$0xf]
    %v285 = vld [vmem:[#allocation8 + $0x38] sm:$0xf]
    %v286 = vld [vmem:[#allocation8 + $0x3c] sm:$0xf]
    %v287 = vld [vmem:[%s5] sm:$0x1]
    %v289 = vlaneseq
    %v290 = vshrl.u32 %v289, 7
    %v291 = vsub.s32 0, %v290
    %v292 = vrot.slane %v287, %v291
    %v310 = vunpack.c.l.b16 %v271
    %v311 = vunpack.c.l.b16 %v272
    %v312 = vunpack.c.l.b16 %v273
    %v313 = vunpack.c.l.b16 %v274
    %v314 = vunpack.c.l.b16 %v275
    %v315 = vunpack.c.l.b16 %v276
    %v316 = vunpack.c.l.b16 %v277
    %v317 = vunpack.c.l.b16 %v278
    %v318 = vunpack.c.l.b16 %v279
    %v319 = vunpack.c.l.b16 %v280
    %v320 = vunpack.c.l.b16 %v281
    %v321 = vunpack.c.l.b16 %v282
    %v322 = vunpack.c.l.b16 %v283
    %v323 = vunpack.c.l.b16 %v284
    %v324 = vunpack.c.l.b16 %v285
    %v325 = vunpack.c.l.b16 %v286
    %v326 = vpack.c.b16 %v311, %v310
    %v327 = vpack.c.b16 %v313, %v312
    %v328 = vpack.c.b16 %v315, %v314
    %v329 = vpack.c.b16 %v317, %v316
    %v330 = vpack.c.b16 %v319, %v318
    %v331 = vpack.c.b16 %v321, %v320
    %v332 = vpack.c.b16 %v323, %v322
    %v333 = vpack.c.b16 %v325, %v324
    %342 = vmatprep.subr.bf16.mxu0 0
    %343 = vmatpush1.bf16.msra.mxu0 %v326
    %344 = vmatprep.subr.bf16.mxu0 0
    %345 = vmatpush1.bf16.msra.mxu0 %v327
    %346 = vmatprep.subr.bf16.mxu0 0
    %347 = vmatpush1.bf16.msra.mxu0 %v328
    %348 = vmatprep.subr.bf16.mxu0 0
    %349 = vmatpush1.bf16.msra.mxu0 %v329
    %350 = vmatprep.subr.bf16.mxu0 0
    %351 = vmatpush1.bf16.msra.mxu0 %v330
    %352 = vmatprep.subr.bf16.mxu0 0
    %353 = vmatpush1.bf16.msra.mxu0 %v331
    %354 = vmatprep.subr.bf16.mxu0 0
    %355 = vmatpush1.bf16.msra.mxu0 %v332
    %356 = vmatprep.subr.bf16.mxu0 0
    %357 = vmatpush1.bf16.msra.mxu0 %v333
    %358 = vmatprep.subr.bf16.mxu0 0
    %359 = vmatpush1.bf16.msra.mxu0 0
    %360 = vmatprep.subr.bf16.mxu0 0
    %361 = vmatpush1.bf16.msra.mxu0 0
    %362 = vmatprep.subr.bf16.mxu0 0
    %363 = vmatpush1.bf16.msra.mxu0 0
    %364 = vmatprep.subr.bf16.mxu0 0
    %365 = vmatpush1.bf16.msra.mxu0 0
    %366 = vmatprep.subr.bf16.mxu0 0
    %367 = vmatpush1.bf16.msra.mxu0 0
    %368 = vmatprep.subr.bf16.mxu0 0
    %369 = vmatpush1.bf16.msra.mxu0 0
    %370 = vmatprep.subr.bf16.mxu0 0
    %371 = vmatpush1.bf16.msra.mxu0 0
    %372 = vmatprep.subr.bf16.mxu0 0
    %373 = vmatpush1.bf16.msra.mxu0 0
    %374 = vmatprep.mubr.bf16.mxu0 0
    %375 = vmatmul.mubr.bf16.gmra.mrb[0].mxu0 %v270
    %v376 = vpop.f32.mrb[0].mxu0
    %v377 = vadd.f32 %v292, %v376
    %v378 = vpop.f32.mrb[0].mxu0
    %v379 = vpop.f32.mrb[0].mxu0
    %v380 = vpop.f32.mrb[0].mxu0
    %381 = vdwg.mxu0
    %v382 = vmax.f32 %v377, 0.0
    %v383 = vpack.c.bf16 %v382, %v382
    %v384 = vld [vmem:[#allocation10] sm:$0xff]
    %v385 = vld [vmem:[#allocation10 + $0x8] sm:$0xff]
    %v386 = vld [vmem:[#allocation10 + $0x10] sm:$0xff]
    %v387 = vld [vmem:[#allocation10 + $0x18] sm:$0xff]
    %v388 = vld [vmem:[#allocation10 + $0x20] sm:$0xff]
    %v389 = vld [vmem:[#allocation10 + $0x28] sm:$0xff]
    %v390 = vld [vmem:[#allocation10 + $0x30] sm:$0xff]
    %v391 = vld [vmem:[#allocation10 + $0x38] sm:$0xff]
    %v392 = vld [vmem:[#allocation10 + $0x40] sm:$0xff]
    %v393 = vld [vmem:[#allocation10 + $0x48] sm:$0xff]
    %v394 = vld [vmem:[#allocation10 + $0x50] sm:$0xff]
    %v395 = vld [vmem:[#allocation10 + $0x58] sm:$0xff]
    %v396 = vld [vmem:[#allocation10 + $0x60] sm:$0xff]
    %v397 = vld [vmem:[#allocation10 + $0x68] sm:$0xff]
    %v398 = vld [vmem:[#allocation10 + $0x70] sm:$0xff]
    %v399 = vld [vmem:[#allocation10 + $0x78] sm:$0xff]
    %v400 = vld [vmem:[%s7] sm:$0x3]
    %v402 = vlaneseq
    %v403 = vshrl.u32 %v402, 7
    %v404 = vsub.s32 0, %v403
    %v405 = vrot.slane %v400, %v404
    %v406 = vlaneseq
    %v407 = vshrl.u32 %v406, 7
    %v408 = vsub.s32 1, %v407
    %v409 = vrot.slane %v400, %v408
    %v428 = vunpack.c.l.b16 %v384
    %v429 = vunpack.c.h.b16 %v384
    %v430 = vunpack.c.l.b16 %v385
    %v431 = vunpack.c.h.b16 %v385
    %v432 = vunpack.c.l.b16 %v386
    %v433 = vunpack.c.h.b16 %v386
    %v434 = vunpack.c.l.b16 %v387
    %v435 = vunpack.c.h.b16 %v387
    %v436 = vunpack.c.l.b16 %v388
    %v437 = vunpack.c.h.b16 %v388
    %v438 = vunpack.c.l.b16 %v389
    %v439 = vunpack.c.h.b16 %v389
    %v440 = vunpack.c.l.b16 %v390
    %v441 = vunpack.c.h.b16 %v390
    %v442 = vunpack.c.l.b16 %v391
    %v443 = vunpack.c.h.b16 %v391
    %v444 = vunpack.c.l.b16 %v392
    %v445 = vunpack.c.h.b16 %v392
    %v446 = vunpack.c.l.b16 %v393
    %v447 = vunpack.c.h.b16 %v393
    %v448 = vunpack.c.l.b16 %v394
    %v449 = vunpack.c.h.b16 %v394
    %v450 = vunpack.c.l.b16 %v395
    %v451 = vunpack.c.h.b16 %v395
    %v452 = vunpack.c.l.b16 %v396
    %v453 = vunpack.c.h.b16 %v396
    %v454 = vunpack.c.l.b16 %v397
    %v455 = vunpack.c.h.b16 %v397
    %v456 = vunpack.c.l.b16 %v398
    %v457 = vunpack.c.h.b16 %v398
    %v458 = vunpack.c.l.b16 %v399
    %v459 = vunpack.c.h.b16 %v399
    %v460 = vpack.c.b16 %v430, %v428
    %v461 = vpack.c.b16 %v431, %v429
    %v462 = vpack.c.b16 %v434, %v432
    %v463 = vpack.c.b16 %v435, %v433
    %v464 = vpack.c.b16 %v438, %v436
    %v465 = vpack.c.b16 %v439, %v437
    %v466 = vpack.c.b16 %v442, %v440
    %v467 = vpack.c.b16 %v443, %v441
    %v468 = vpack.c.b16 %v446, %v444
    %v469 = vpack.c.b16 %v447, %v445
    %v470 = vpack.c.b16 %v450, %v448
    %v471 = vpack.c.b16 %v451, %v449
    %v472 = vpack.c.b16 %v454, %v452
    %v473 = vpack.c.b16 %v455, %v453
    %v474 = vpack.c.b16 %v458, %v456
    %v475 = vpack.c.b16 %v459, %v457
    %492 = vmatprep.subr.bf16.mxu0 %v461
    %493 = vmatpush1.bf16.msra.mxu0 %v460
    %494 = vmatprep.subr.bf16.mxu0 %v463
    %495 = vmatpush1.bf16.msra.mxu0 %v462
    %496 = vmatprep.subr.bf16.mxu0 %v465
    %497 = vmatpush1.bf16.msra.mxu0 %v464
    %498 = vmatprep.subr.bf16.mxu0 %v467
    %499 = vmatpush1.bf16.msra.mxu0 %v466
    %500 = vmatprep.subr.bf16.mxu0 %v469
    %501 = vmatpush1.bf16.msra.mxu0 %v468
    %502 = vmatprep.subr.bf16.mxu0 %v471
    %503 = vmatpush1.bf16.msra.mxu0 %v470
    %504 = vmatprep.subr.bf16.mxu0 %v473
    %505 = vmatpush1.bf16.msra.mxu0 %v472
    %506 = vmatprep.subr.bf16.mxu0 %v475
    %507 = vmatpush1.bf16.msra.mxu0 %v474
    %508 = vmatprep.subr.bf16.mxu0 0
    %509 = vmatpush1.bf16.msra.mxu0 0
    %510 = vmatprep.subr.bf16.mxu0 0
    %511 = vmatpush1.bf16.msra.mxu0 0
    %512 = vmatprep.subr.bf16.mxu0 0
    %513 = vmatpush1.bf16.msra.mxu0 0
    %514 = vmatprep.subr.bf16.mxu0 0
    %515 = vmatpush1.bf16.msra.mxu0 0
    %516 = vmatprep.subr.bf16.mxu0 0
    %517 = vmatpush1.bf16.msra.mxu0 0
    %518 = vmatprep.subr.bf16.mxu0 0
    %519 = vmatpush1.bf16.msra.mxu0 0
    %520 = vmatprep.subr.bf16.mxu0 0
    %521 = vmatpush1.bf16.msra.mxu0 0
    %522 = vmatprep.subr.bf16.mxu0 0
    %523 = vmatpush1.bf16.msra.mxu0 0
    %524 = vmatprep.mubr.bf16.mxu0 0
    %525 = vmatmul.mubr.bf16.gmra.mrb[0].mxu0 %v383
    %v526 = vpop.f32.mrb[0].mxu0
    %v527 = vadd.f32 %v405, %v526
    %v528 = vpop.f32.mrb[0].mxu0
    %v529 = vadd.f32 %v409, %v528
    %v530 = vpop.f32.mrb[0].mxu0
    %v531 = vpop.f32.mrb[0].mxu0
    %532 = vdwg.mxu0
    %v533 = vld [vmem:[#allocation5] sm:$0xff]
    %v534 = vmul.f32 %v529, 0.5
    %v535 = vmul.f32 %v534, 1.442695
    %v536 = vpow.pop %v535
    %v537 = vmul.f32 %v533, %v536
    %v538 = vadd.f32 %v527, %v537
    %v539 = vpack.c.bf16 %v538, %v538
    %v540 = vld [vmem:[#allocation11] sm:$0xf]
    %v541 = vld [vmem:[#allocation11 + $0x4] sm:$0xf]
    %v542 = vld [vmem:[#allocation11 + $0x8] sm:$0xf]
    %v543 = vld [vmem:[#allocation11 + $0xc] sm:$0xf]
    %v544 = vld [vmem:[#allocation11 + $0x10] sm:$0xf]
    %v545 = vld [vmem:[#allocation11 + $0x14] sm:$0xf]
    %v546 = vld [vmem:[#allocation11 + $0x18] sm:$0xf]
    %v547 = vld [vmem:[#allocation11 + $0x1c] sm:$0xf]
    %v548 = vld [vmem:[#allocation11 + $0x20] sm:$0xf]
    %v549 = vld [vmem:[#allocation11 + $0x24] sm:$0xf]
    %v550 = vld [vmem:[#allocation11 + $0x28] sm:$0xf]
    %v551 = vld [vmem:[#allocation11 + $0x2c] sm:$0xf]
    %v552 = vld [vmem:[#allocation11 + $0x30] sm:$0xf]
    %v553 = vld [vmem:[#allocation11 + $0x34] sm:$0xf]
    %v554 = vld [vmem:[#allocation11 + $0x38] sm:$0xf]
    %v555 = vld [vmem:[#allocation11 + $0x3c] sm:$0xf]
    %v556 = vld [vmem:[%s9] sm:$0x1]
    %v558 = vlaneseq
    %v559 = vshrl.u32 %v558, 7
    %v560 = vsub.s32 0, %v559
    %v561 = vrot.slane %v556, %v560
    %v579 = vunpack.c.l.b16 %v540
    %v580 = vunpack.c.l.b16 %v541
    %v581 = vunpack.c.l.b16 %v542
    %v582 = vunpack.c.l.b16 %v543
    %v583 = vunpack.c.l.b16 %v544
    %v584 = vunpack.c.l.b16 %v545
    %v585 = vunpack.c.l.b16 %v546
    %v586 = vunpack.c.l.b16 %v547
    %v587 = vunpack.c.l.b16 %v548
    %v588 = vunpack.c.l.b16 %v549
    %v589 = vunpack.c.l.b16 %v550
    %v590 = vunpack.c.l.b16 %v551
    %v591 = vunpack.c.l.b16 %v552
    %v592 = vunpack.c.l.b16 %v553
    %v593 = vunpack.c.l.b16 %v554
    %v594 = vunpack.c.l.b16 %v555
    %v595 = vpack.c.b16 %v580, %v579
    %v596 = vpack.c.b16 %v582, %v581
    %v597 = vpack.c.b16 %v584, %v583
    %v598 = vpack.c.b16 %v586, %v585
    %v599 = vpack.c.b16 %v588, %v587
    %v600 = vpack.c.b16 %v590, %v589
    %v601 = vpack.c.b16 %v592, %v591
    %v602 = vpack.c.b16 %v594, %v593
    %611 = vmatprep.subr.bf16.mxu0 0
    %612 = vmatpush1.bf16.msra.mxu0 %v595
    %613 = vmatprep.subr.bf16.mxu0 0
    %614 = vmatpush1.bf16.msra.mxu0 %v596
    %615 = vmatprep.subr.bf16.mxu0 0
    %616 = vmatpush1.bf16.msra.mxu0 %v597
    %617 = vmatprep.subr.bf16.mxu0 0
    %618 = vmatpush1.bf16.msra.mxu0 %v598
    %619 = vmatprep.subr.bf16.mxu0 0
    %620 = vmatpush1.bf16.msra.mxu0 %v599
    %621 = vmatprep.subr.bf16.mxu0 0
    %622 = vmatpush1.bf16.msra.mxu0 %v600
    %623 = vmatprep.subr.bf16.mxu0 0
    %624 = vmatpush1.bf16.msra.mxu0 %v601
    %625 = vmatprep.subr.bf16.mxu0 0
    %626 = vmatpush1.bf16.msra.mxu0 %v602
    %627 = vmatprep.subr.bf16.mxu0 0
    %628 = vmatpush1.bf16.msra.mxu0 0
    %629 = vmatprep.subr.bf16.mxu0 0
    %630 = vmatpush1.bf16.msra.mxu0 0
    %631 = vmatprep.subr.bf16.mxu0 0
    %632 = vmatpush1.bf16.msra.mxu0 0
    %633 = vmatprep.subr.bf16.mxu0 0
    %634 = vmatpush1.bf16.msra.mxu0 0
    %635 = vmatprep.subr.bf16.mxu0 0
    %636 = vmatpush1.bf16.msra.mxu0 0
    %637 = vmatprep.subr.bf16.mxu0 0
    %638 = vmatpush1.bf16.msra.mxu0 0
    %639 = vmatprep.subr.bf16.mxu0 0
    %640 = vmatpush1.bf16.msra.mxu0 0
    %641 = vmatprep.subr.bf16.mxu0 0
    %642 = vmatpush1.bf16.msra.mxu0 0
    %643 = vmatprep.mubr.bf16.mxu0 0
    %644 = vmatmul.mubr.bf16.gmra.mrb[0].mxu0 %v539
    %v645 = vpop.f32.mrb[0].mxu0
    %v646 = vadd.f32 %v561, %v645
    %v647 = vpop.f32.mrb[0].mxu0
    %v648 = vpop.f32.mrb[0].mxu0
    %v649 = vpop.f32.mrb[0].mxu0
    %650 = vdwg.mxu0
    %v651 = vmax.f32 %v646, 0.0
    %v652 = vpack.c.bf16 %v651, %v651
    %v653 = vld [vmem:[#allocation13] sm:$0xf]
    %v654 = vld [vmem:[#allocation13 + $0x4] sm:$0xf]
    %v655 = vld [vmem:[#allocation13 + $0x8] sm:$0xf]
    %v656 = vld [vmem:[#allocation13 + $0xc] sm:$0xf]
    %v657 = vld [vmem:[#allocation13 + $0x10] sm:$0xf]
    %v658 = vld [vmem:[#allocation13 + $0x14] sm:$0xf]
    %v659 = vld [vmem:[#allocation13 + $0x18] sm:$0xf]
    %v660 = vld [vmem:[#allocation13 + $0x1c] sm:$0xf]
    %v661 = vld [vmem:[#allocation13 + $0x20] sm:$0xf]
    %v662 = vld [vmem:[#allocation13 + $0x24] sm:$0xf]
    %v663 = vld [vmem:[#allocation13 + $0x28] sm:$0xf]
    %v664 = vld [vmem:[#allocation13 + $0x2c] sm:$0xf]
    %v665 = vld [vmem:[#allocation13 + $0x30] sm:$0xf]
    %v666 = vld [vmem:[#allocation13 + $0x34] sm:$0xf]
    %v667 = vld [vmem:[#allocation13 + $0x38] sm:$0xf]
    %v668 = vld [vmem:[#allocation13 + $0x3c] sm:$0xf]
    %v669 = vld [vmem:[%s11] sm:$0x1]
    %v671 = vlaneseq
    %v672 = vshrl.u32 %v671, 7
    %v673 = vsub.s32 0, %v672
    %v674 = vrot.slane %v669, %v673
    %v692 = vunpack.c.l.b16 %v653
    %v693 = vunpack.c.l.b16 %v654
    %v694 = vunpack.c.l.b16 %v655
    %v695 = vunpack.c.l.b16 %v656
    %v696 = vunpack.c.l.b16 %v657
    %v697 = vunpack.c.l.b16 %v658
    %v698 = vunpack.c.l.b16 %v659
    %v699 = vunpack.c.l.b16 %v660
    %v700 = vunpack.c.l.b16 %v661
    %v701 = vunpack.c.l.b16 %v662
    %v702 = vunpack.c.l.b16 %v663
    %v703 = vunpack.c.l.b16 %v664
    %v704 = vunpack.c.l.b16 %v665
    %v705 = vunpack.c.l.b16 %v666
    %v706 = vunpack.c.l.b16 %v667
    %v707 = vunpack.c.l.b16 %v668
    %v708 = vpack.c.b16 %v693, %v692
    %v709 = vpack.c.b16 %v695, %v694
    %v710 = vpack.c.b16 %v697, %v696
    %v711 = vpack.c.b16 %v699, %v698
    %v712 = vpack.c.b16 %v701, %v700
    %v713 = vpack.c.b16 %v703, %v702
    %v714 = vpack.c.b16 %v705, %v704
    %v715 = vpack.c.b16 %v707, %v706
    %724 = vmatprep.subr.bf16.mxu0 0
    %725 = vmatpush1.bf16.msra.mxu0 %v708
    %726 = vmatprep.subr.bf16.mxu0 0
    %727 = vmatpush1.bf16.msra.mxu0 %v709
    %728 = vmatprep.subr.bf16.mxu0 0
    %729 = vmatpush1.bf16.msra.mxu0 %v710
    %730 = vmatprep.subr.bf16.mxu0 0
    %731 = vmatpush1.bf16.msra.mxu0 %v711
    %732 = vmatprep.subr.bf16.mxu0 0
    %733 = vmatpush1.bf16.msra.mxu0 %v712
    %734 = vmatprep.subr.bf16.mxu0 0
    %735 = vmatpush1.bf16.msra.mxu0 %v713
    %736 = vmatprep.subr.bf16.mxu0 0
    %737 = vmatpush1.bf16.msra.mxu0 %v714
    %738 = vmatprep.subr.bf16.mxu0 0
    %739 = vmatpush1.bf16.msra.mxu0 %v715
    %740 = vmatprep.subr.bf16.mxu0 0
    %741 = vmatpush1.bf16.msra.mxu0 0
    %742 = vmatprep.subr.bf16.mxu0 0
    %743 = vmatpush1.bf16.msra.mxu0 0
    %744 = vmatprep.subr.bf16.mxu0 0
    %745 = vmatpush1.bf16.msra.mxu0 0
    %746 = vmatprep.subr.bf16.mxu0 0
    %747 = vmatpush1.bf16.msra.mxu0 0
    %748 = vmatprep.subr.bf16.mxu0 0
    %749 = vmatpush1.bf16.msra.mxu0 0
    %750 = vmatprep.subr.bf16.mxu0 0
    %751 = vmatpush1.bf16.msra.mxu0 0
    %752 = vmatprep.subr.bf16.mxu0 0
    %753 = vmatpush1.bf16.msra.mxu0 0
    %754 = vmatprep.subr.bf16.mxu0 0
    %755 = vmatpush1.bf16.msra.mxu0 0
    %756 = vmatprep.mubr.bf16.mxu0 0
    %757 = vmatmul.mubr.bf16.gmra.mrb[0].mxu0 %v652
    %v758 = vpop.f32.mrb[0].mxu0
    %v759 = vadd.f32 %v674, %v758
    %v760 = vpop.f32.mrb[0].mxu0
    %v761 = vpop.f32.mrb[0].mxu0
    %v762 = vpop.f32.mrb[0].mxu0
    %763 = vdwg.mxu0
    %v764 = vmax.f32 %v759, 0.0
    %v765 = vpack.c.bf16 %v764, %v764
    %v766 = vld [vmem:[#allocation14] sm:$0xf]
    %v767 = vld [vmem:[#allocation14 + $0x4] sm:$0xf]
    %v768 = vld [vmem:[#allocation14 + $0x8] sm:$0xf]
    %v769 = vld [vmem:[#allocation14 + $0xc] sm:$0xf]
    %v770 = vld [vmem:[#allocation14 + $0x10] sm:$0xf]
    %v771 = vld [vmem:[#allocation14 + $0x14] sm:$0xf]
    %v772 = vld [vmem:[#allocation14 + $0x18] sm:$0xf]
    %v773 = vld [vmem:[#allocation14 + $0x1c] sm:$0xf]
    %v774 = vld [vmem:[#allocation14 + $0x20] sm:$0xf]
    %v775 = vld [vmem:[#allocation14 + $0x24] sm:$0xf]
    %v776 = vld [vmem:[#allocation14 + $0x28] sm:$0xf]
    %v777 = vld [vmem:[#allocation14 + $0x2c] sm:$0xf]
    %v778 = vld [vmem:[#allocation14 + $0x30] sm:$0xf]
    %v779 = vld [vmem:[#allocation14 + $0x34] sm:$0xf]
    %v780 = vld [vmem:[#allocation14 + $0x38] sm:$0xf]
    %v781 = vld [vmem:[#allocation14 + $0x3c] sm:$0xf]
    %v782 = vld [vmem:[%s13] sm:$0x1]
    %v784 = vlaneseq
    %v785 = vshrl.u32 %v784, 7
    %v786 = vsub.s32 0, %v785
    %v787 = vrot.slane %v782, %v786
    %v805 = vunpack.c.l.b16 %v766
    %v806 = vunpack.c.l.b16 %v767
    %v807 = vunpack.c.l.b16 %v768
    %v808 = vunpack.c.l.b16 %v769
    %v809 = vunpack.c.l.b16 %v770
    %v810 = vunpack.c.l.b16 %v771
    %v811 = vunpack.c.l.b16 %v772
    %v812 = vunpack.c.l.b16 %v773
    %v813 = vunpack.c.l.b16 %v774
    %v814 = vunpack.c.l.b16 %v775
    %v815 = vunpack.c.l.b16 %v776
    %v816 = vunpack.c.l.b16 %v777
    %v817 = vunpack.c.l.b16 %v778
    %v818 = vunpack.c.l.b16 %v779
    %v819 = vunpack.c.l.b16 %v780
    %v820 = vunpack.c.l.b16 %v781
    %v821 = vpack.c.b16 %v806, %v805
    %v822 = vpack.c.b16 %v808, %v807
    %v823 = vpack.c.b16 %v810, %v809
    %v824 = vpack.c.b16 %v812, %v811
    %v825 = vpack.c.b16 %v814, %v813
    %v826 = vpack.c.b16 %v816, %v815
    %v827 = vpack.c.b16 %v818, %v817
    %v828 = vpack.c.b16 %v820, %v819
    %837 = vmatprep.subr.bf16.mxu0 0
    %838 = vmatpush1.bf16.msra.mxu0 %v821
    %839 = vmatprep.subr.bf16.mxu0 0
    %840 = vmatpush1.bf16.msra.mxu0 %v822
    %841 = vmatprep.subr.bf16.mxu0 0
    %842 = vmatpush1.bf16.msra.mxu0 %v823
    %843 = vmatprep.subr.bf16.mxu0 0
    %844 = vmatpush1.bf16.msra.mxu0 %v824
    %845 = vmatprep.subr.bf16.mxu0 0
    %846 = vmatpush1.bf16.msra.mxu0 %v825
    %847 = vmatprep.subr.bf16.mxu0 0
    %848 = vmatpush1.bf16.msra.mxu0 %v826
    %849 = vmatprep.subr.bf16.mxu0 0
    %850 = vmatpush1.bf16.msra.mxu0 %v827
    %851 = vmatprep.subr.bf16.mxu0 0
    %852 = vmatpush1.bf16.msra.mxu0 %v828
    %853 = vmatprep.subr.bf16.mxu0 0
    %854 = vmatpush1.bf16.msra.mxu0 0
    %855 = vmatprep.subr.bf16.mxu0 0
    %856 = vmatpush1.bf16.msra.mxu0 0
    %857 = vmatprep.subr.bf16.mxu0 0
    %858 = vmatpush1.bf16.msra.mxu0 0
    %859 = vmatprep.subr.bf16.mxu0 0
    %860 = vmatpush1.bf16.msra.mxu0 0
    %861 = vmatprep.subr.bf16.mxu0 0
    %862 = vmatpush1.bf16.msra.mxu0 0
    %863 = vmatprep.subr.bf16.mxu0 0
    %864 = vmatpush1.bf16.msra.mxu0 0
    %865 = vmatprep.subr.bf16.mxu0 0
    %866 = vmatpush1.bf16.msra.mxu0 0
    %867 = vmatprep.subr.bf16.mxu0 0
    %868 = vmatpush1.bf16.msra.mxu0 0
    %869 = vmatprep.mubr.bf16.mxu0 0
    %870 = vmatmul.mubr.bf16.gmra.mrb[0].mxu0 %v765
    %v871 = vpop.f32.mrb[0].mxu0
    %v872 = vadd.f32 %v787, %v871
    %v873 = vpop.f32.mrb[0].mxu0
    %v874 = vpop.f32.mrb[0].mxu0
    %v875 = vpop.f32.mrb[0].mxu0
    %876 = vdwg.mxu0
    %v877 = vpack.c.bf16 %v872, %v872
    %878 = vst [vmem:[#allocation16] sm:$0xf] %v877
    %879 = vst [vmem:[#allocation17] sm:$0xff] %v527
    %880 = vst [vmem:[#allocation17 + $0x8] sm:$0xff] %v529
    // Predicated region
    $region90: #{tpu_custom_call.1} parent=1 // pred_check
      _
    $region91: #{tpu_custom_call.1} parent=1 // pred_check_branch
      %882 = sbr.rel (0) target = $region93
    $region92: #{tpu_custom_call.1} parent=1 // pred_region
      %s884 = ssub.s32 64, 64
      %885 = vsyncadd [#allocation4], %s884
      %s887 = sshll.u32 [#allocation16], 4
      %s888 = int_to_ptr.vmem [resolvable:$true] %s887
      %890 = dma.vmem_to_hbm [thread:$0]  %s888, 64, %s14, [#allocation4]
    $region93: #{tpu_custom_call.1} parent=1 // pred_fallthru
      _
    // Predicated region
    $region94: #{tpu_custom_call.1} parent=1 // pred_check
      _
    $region95: #{tpu_custom_call.1} parent=1 // pred_check_branch
      %892 = sbr.rel (0) target = $region97
    $region96: #{tpu_custom_call.1} parent=1 // pred_region
      %s894 = ssub.s32 256, 256
      %895 = vsyncadd [#allocation18], %s894
      %s897 = sshll.u32 [#allocation17], 4
      %s898 = int_to_ptr.vmem [resolvable:$true] %s897
      %900 = dma.vmem_to_hbm [thread:$0]  %s898, 256, %s15, [#allocation18]
    $region97: #{tpu_custom_call.1} parent=1 // pred_fallthru
      _
    // Predicated region
    $region98: #{tpu_custom_call.1} parent=1 // pred_check
      _
    $region99: #{tpu_custom_call.1} parent=1 // pred_check_branch
      %902 = sbr.rel (0) target = $region101
    $region100: #{tpu_custom_call.1} parent=1 // pred_region
      %903 = dma.done [#allocation4], 64
    $region101: #{tpu_custom_call.1} parent=1 // pred_fallthru
      _
    // Predicated region
    $region102: #{tpu_custom_call.1} parent=1 // pred_check
      _
    $region103: #{tpu_custom_call.1} parent=1 // pred_check_branch
      %905 = sbr.rel (0) target = $region105
    $region104: #{tpu_custom_call.1} parent=1 // pred_region
      %906 = dma.done [#allocation18], 256
    $region105: #{tpu_custom_call.1} parent=1 // pred_fallthru
      _
    %907 = vsyncpa [#allocation3], 1
    %908 = vsyncpa [#allocation6], 1
    %909 = vsyncpa [#allocation9], 1
    %910 = vsyncpa [#allocation12], 1
    %911 = vsyncpa [#allocation15], 1
    %912 = vsyncpa [#allocation4], 1
    %913 = vsyncpa [#allocation18], 1

</llo_original>
